<compile_context>
chip_gen: v7x
topology: tpu7x:2x2x1
jax: 0.10.0
libtpu: 0.0.40
codegen_flags: <defaults>
</compile_context>

<pallas_src>
import jax
import jax.numpy as jnp
from jax.experimental import pallas as pl
from jax.experimental.pallas import tpu as pltpu

_BN_EPS = 1e-5
_MXU_DTYPE = jnp.bfloat16   # matmul operand dtype (f32 accumulate / epilogue)


# -----------------------------------------------------------------------------
# Pallas kernel: fused (all-branch) dilated conv + folded BN + ReLU
#                [+ residual add + final ReLU]
# -----------------------------------------------------------------------------
def _make_conv_kernel(*, K, dilation, T, pad_left, pad_total, relu,
                      add_residual, mxu_dtype):
    def kernel(*refs):
        it = iter(refs)
        x_ref = next(it)                       # (1, T, Cin) f32
        w_ref = next(it)                       # (K, Cin, Cout) bf16 (branch-fused)
        scale_ref = next(it)                   # (1, Cout) f32 folded BN scale
        bias_ref = next(it)                    # (1, Cout) f32 folded BN bias (+conv bias)
        res_ref = next(it) if add_residual else None   # (1, T, Cout) f32
        o_ref = next(it)                       # (1, T, Cout) f32
        xpad_ref = next(it) if pad_total > 0 else None # (T+pad_total, Cin) f32 scratch

        cout = w_ref.shape[-1]
        wf = w_ref[...]                        # (K, Cin, Cout)

        if pad_total > 0:
            # In-kernel symmetric padding == Conv1d(padding) + symmetric Chomp1d.
            xpad_ref[...] = jnp.zeros(xpad_ref.shape, xpad_ref.dtype)
            xpad_ref[pad_left:pad_left + T, :] = x_ref[0]
            xp = xpad_ref[...]                 # (T + pad_total, Cin)
        else:
            xp = x_ref[0]                      # (T, Cin)

        acc = jnp.zeros((T, cout), jnp.float32)
        for k in range(K):                     # static unroll over taps
            xs = xp[k * dilation:k * dilation + T, :].astype(mxu_dtype)
            acc = acc + jnp.dot(xs, wf[k], preferred_element_type=jnp.float32)

        y = acc * scale_ref[...] + bias_ref[...]
        if relu:
            y = jnp.maximum(y, 0.0)            # per-branch (stage) activation
        if add_residual:
            y = jnp.maximum(y + res_ref[0], 0.0)   # fused residual add + final ReLU
        o_ref[0] = y.astype(o_ref.dtype)

    return kernel


# -----------------------------------------------------------------------------
# Wrapper
# -----------------------------------------------------------------------------
def fused_conv_bn_act(x, w, scale, bias, *, dilation=1, pad_total=0,
                      relu=True, residual=None, mxu_dtype=_MXU_DTYPE):
    """x: (B, T, Cin) f32; w: (K, Cin, Cout) branch-fused, taps center-aligned;
    scale/bias: (Cout,) folded BN.  pad_total = (K-1)*dilation, symmetric.
    If `residual` is given (B, T, Cout), computes relu(relu(conv_bn) + residual)."""
    B, T, Cin = x.shape
    K, _, Cout = w.shape
    assert pad_total == (K - 1) * dilation
    assert pad_total % 2 == 0, "symmetric chomp needs even padding (odd kernels)"
    pad_left = pad_total // 2

    scale2 = scale.reshape(1, Cout).astype(jnp.float32)
    bias2 = bias.reshape(1, Cout).astype(jnp.float32)
    w = w.astype(mxu_dtype)
    x = x.astype(jnp.float32)

    inputs = [x, w, scale2, bias2]
    in_specs = [
        pl.BlockSpec((1, T, Cin), lambda b: (b, 0, 0)),
        pl.BlockSpec((K, Cin, Cout), lambda b: (0, 0, 0)),
        pl.BlockSpec((1, Cout), lambda b: (0, 0)),
        pl.BlockSpec((1, Cout), lambda b: (0, 0)),
    ]
    if residual is not None:
        inputs.append(residual.astype(jnp.float32))
        in_specs.append(pl.BlockSpec((1, T, Cout), lambda b: (b, 0, 0)))

    scratch_shapes = []
    if pad_total > 0:
        scratch_shapes.append(pltpu.VMEM((T + pad_total, Cin), jnp.float32))

    kernel = _make_conv_kernel(K=K, dilation=dilation, T=T, pad_left=pad_left,
                               pad_total=pad_total, relu=relu,
                               add_residual=residual is not None,
                               mxu_dtype=mxu_dtype)

    bytes_accessed = (B * T * Cin * 4                       # x
                      + K * Cin * Cout * 2                  # bf16 weights
                      + 2 * Cout * 4                        # scale/bias
                      + B * T * Cout * 4                    # output
                      + (B * T * Cout * 4 if residual is not None else 0))
    cost = pl.CostEstimate(flops=2 * B * T * K * Cin * Cout,
                           transcendentals=0,
                           bytes_accessed=int(bytes_accessed))

    return pl.pallas_call(
        kernel,
        out_shape=jax.ShapeDtypeStruct((B, T, Cout), jnp.float32),
        grid_spec=pltpu.PrefetchScalarGridSpec(
            num_scalar_prefetch=0,
            grid=(B,),
            in_specs=in_specs,
            out_specs=pl.BlockSpec((1, T, Cout), lambda b: (b, 0, 0)),
            scratch_shapes=scratch_shapes,
        ),
        compiler_params=pltpu.CompilerParams(
            dimension_semantics=("parallel",)),
        cost_estimate=cost,
    )(*inputs)


# -----------------------------------------------------------------------------
# Deterministic synthetic parameters (BatchNorm folded into scale/bias)
# -----------------------------------------------------------------------------
def _fold_bn(key, c, conv_bias):
    k1, k2, k3, k4 = jax.random.split(key, 4)
    gamma = 1.0 + 0.1 * jax.random.normal(k1, (c,), jnp.float32)
    beta = 0.1 * jax.random.normal(k2, (c,), jnp.float32)
    mean = 0.1 * jax.random.normal(k3, (c,), jnp.float32)
    var = 1.0 + 0.1 * jnp.abs(jax.random.normal(k4, (c,), jnp.float32))
    scale = gamma / jnp.sqrt(var + _BN_EPS)
    bias = beta + scale * (conv_bias - mean)
    return scale, bias


def build_block_params(key, in_channels, out_channels, kernel_sizes, *,
                       stride=1, dilation=1, conv_num=2):
    # TODO(synk): stride != 1, dwpw=True, and act_type other than 'relu' are
    # not implemented (the demo module configuration does not use them).
    assert stride == 1
    branches = len(kernel_sizes)
    assert out_channels % branches == 0
    assert all(ks % 2 == 1 for ks in kernel_sizes)
    branch_out = out_channels // branches
    k_max = max(kernel_sizes)

    params = {"dilation": dilation,
              "pad_total": (k_max - 1) * dilation,
              "stages": [], "down": None}

    for conv_idx in range(conv_num):
        cin = in_channels if conv_idx == 0 else out_channels
        # Branch fusion: zero-pad shorter kernels to k_max (center-aligned taps,
        # exact under symmetric chomp) and concatenate branches along Cout.
        w_fused = jnp.zeros((k_max, cin, out_channels), jnp.float32)
        scales, biases = [], []
        for b_idx, ks in enumerate(kernel_sizes):
            key, kw, kb, kbn = jax.random.split(key, 4)
            w = 0.1 * jax.random.normal(kw, (ks, cin, branch_out), jnp.float32)
            conv_b = 0.1 * jax.random.normal(kb, (branch_out,), jnp.float32)
            s, bvec = _fold_bn(kbn, branch_out, conv_b)
            off = (k_max - ks) // 2
            w_fused = w_fused.at[off:off + ks, :,
                                 b_idx * branch_out:(b_idx + 1) * branch_out].set(w)
            scales.append(s)
            biases.append(bvec)
        params["stages"].append({"w": w_fused.astype(_MXU_DTYPE),
                                 "scale": jnp.concatenate(scales),
                                 "bias": jnp.concatenate(biases)})

    # DownSample1d (1x1 Conv + BN), same condition as the PyTorch module.
    if stride != 1 or in_channels // branches != out_channels:
        key, kw, kb, kbn = jax.random.split(key, 4)
        w = 0.1 * jax.random.normal(kw, (1, in_channels, out_channels), jnp.float32)
        conv_b = 0.1 * jax.random.normal(kb, (out_channels,), jnp.float32)
        s, bvec = _fold_bn(kbn, out_channels, conv_b)
        params["down"] = {"w": w.astype(_MXU_DTYPE), "scale": s, "bias": bvec}
    return params


# -----------------------------------------------------------------------------
# Block forward (eval mode: Dropout = identity)
# -----------------------------------------------------------------------------
def multibranch_tcn_block(params, x):
    """x: (B, C_in, T) as in PyTorch.  Returns (B, out_channels, T)."""
    y = jnp.transpose(x, (0, 2, 1)).astype(jnp.float32)   # -> (B, T, Cin)
    d = params["dilation"]
    pad_total = params["pad_total"]

    if params["down"] is not None:
        residual = fused_conv_bn_act(y, params["down"]["w"],
                                     params["down"]["scale"],
                                     params["down"]["bias"],
                                     dilation=1, pad_total=0, relu=False)
    else:
        residual = y

    h = y
    n_stages = len(params["stages"])
    for i, st in enumerate(params["stages"]):
        last = (i == n_stages - 1)
        # Last stage fuses: branch ReLU -> (+ residual) -> final ReLU.
        h = fused_conv_bn_act(h, st["w"], st["scale"], st["bias"],
                              dilation=d, pad_total=pad_total, relu=True,
                              residual=residual if last else None)
        # dropout{i}: identity in eval mode

    return jnp.transpose(h, (0, 2, 1))                     # -> (B, C_out, T)


# -----------------------------------------------------------------------------
if __name__ == "__main__":
    B, C_IN, T = 2, 4, 16
    OUT_CHANNELS = 8
    KERNEL_SIZES = [3, 5]
    DILATION = 2
    STRIDE = 1

    key = jax.random.PRNGKey(0)
    k_params, k_x = jax.random.split(key)
    params = build_block_params(k_params, C_IN, OUT_CHANNELS, KERNEL_SIZES,
                                stride=STRIDE, dilation=DILATION, conv_num=2)
    x = jax.random.normal(k_x, (B, C_IN, T), jnp.float32)

    fwd = jax.jit(lambda inp: multibranch_tcn_block(params, inp))
    out = fwd(x)
    jax.block_until_ready(out)
    assert out.shape == (B, OUT_CHANNELS, T), out.shape
    print("KERNEL_OK")
</pallas_src>

<mosaic_0001>
module attributes {stable_mosaic.version = 11 : i64} {
  func.func @kernel(%arg0: i32, %arg1: memref<1x16x8xf32, #tpu.memory_space<vmem>>, %arg2: memref<5x8x8xbf16, #tpu.memory_space<vmem>>, %arg3: memref<1x8xf32, #tpu.memory_space<vmem>>, %arg4: memref<1x8xf32, #tpu.memory_space<vmem>>, %arg5: memref<1x16x8xf32, #tpu.memory_space<vmem>>, %arg6: memref<1x16x8xf32, #tpu.memory_space<vmem>>, %arg7: memref<24x8xf32, #tpu.memory_space<vmem>>) attributes {dimension_semantics = [#tpu.dimension_semantics<parallel>], iteration_bounds = array<i64: 2>, scalar_prefetch = 0 : i64, scratch_operands = 1 : i64, tpu.core_type = #tpu.core_type<tc>, window_params = [{transform_indices = @transform_0, window_bounds = array<i64: 1, 16, 8>}, {pipeline_mode = #tpu.pipeline_mode<synchronous>, transform_indices = @transform_1, window_bounds = array<i64: 5, 8, 8>}, {pipeline_mode = #tpu.pipeline_mode<synchronous>, transform_indices = @transform_2, window_bounds = array<i64: 1, 8>}, {pipeline_mode = #tpu.pipeline_mode<synchronous>, transform_indices = @transform_3, window_bounds = array<i64: 1, 8>}, {transform_indices = @transform_4, window_bounds = array<i64: 1, 16, 8>}, {transform_indices = @transform_5, window_bounds = array<i64: 1, 16, 8>}]} {
    %c0 = arith.constant 0 : index
    %c0_0 = arith.constant 0 : index
    %c0_1 = arith.constant 0 : index
    %0 = vector.load %arg2[%c0, %c0_0, %c0_1] : memref<5x8x8xbf16, #tpu.memory_space<vmem>>, vector<5x8x8xbf16>
    %cst = arith.constant 0.000000e+00 : f32
    %1 = vector.broadcast %cst : f32 to vector<24x8xf32>
    %c0_2 = arith.constant 0 : index
    %c0_3 = arith.constant 0 : index
    %2 = vector.load %arg7[%c0_2, %c0_3] : memref<24x8xf32, #tpu.memory_space<vmem>>, vector<24x8xf32>
    tpu.vector_store %arg7[%c0_2, %c0_3], %1 {strides = array<i32>} : memref<24x8xf32, #tpu.memory_space<vmem>>, vector<24x8xf32>,
    %c0_4 = arith.constant 0 : index
    %c0_5 = arith.constant 0 : index
    %c0_6 = arith.constant 0 : index
    %3 = vector.load %arg1[%c0_4, %c0_5, %c0_6] : memref<1x16x8xf32, #tpu.memory_space<vmem>>, vector<1x16x8xf32>
    %4 = vector.shape_cast %3 : vector<1x16x8xf32> to vector<16x8xf32>
    %c4 = arith.constant 4 : index
    %c0_7 = arith.constant 0 : index
    %5 = vector.load %arg7[%c4, %c0_7] : memref<24x8xf32, #tpu.memory_space<vmem>>, vector<16x8xf32>
    tpu.vector_store %arg7[%c4, %c0_7], %4 {strides = array<i32>} : memref<24x8xf32, #tpu.memory_space<vmem>>, vector<16x8xf32>,
    %c0_8 = arith.constant 0 : index
    %c0_9 = arith.constant 0 : index
    %6 = vector.load %arg7[%c0_8, %c0_9] : memref<24x8xf32, #tpu.memory_space<vmem>>, vector<24x8xf32>
    %cst_10 = arith.constant 0.000000e+00 : f32
    %7 = vector.broadcast %cst_10 : f32 to vector<16x8xf32>
    %8 = vector.extract_strided_slice %6 {offsets = [0, 0], sizes = [16, 8], strides = [1, 1]} : vector<24x8xf32> to vector<16x8xf32>
    %9 = arith.truncf %8 : vector<16x8xf32> to vector<16x8xbf16>
    %10 = vector.extract_strided_slice %0 {offsets = [0, 0, 0], sizes = [1, 8, 8], strides = [1, 1, 1]} : vector<5x8x8xbf16> to vector<1x8x8xbf16>
    %11 = vector.shape_cast %10 : vector<1x8x8xbf16> to vector<8x8xbf16>
    %cst_11 = arith.constant dense<0.000000e+00> : vector<16x8xf32>
    %12 = tpu.matmul %9, %11, %cst_11 {dimension_numbers = #tpu.dot_dimension_numbers<[1], [0], [0], [1], [0, 0, 1, 1], [], []>} : vector<16x8xbf16>, vector<8x8xbf16>, vector<16x8xf32> -> vector<16x8xf32>
    %13 = arith.addf %7, %12 : vector<16x8xf32>
    %14 = vector.extract_strided_slice %6 {offsets = [2, 0], sizes = [16, 8], strides = [1, 1]} : vector<24x8xf32> to vector<16x8xf32>
    %15 = arith.truncf %14 : vector<16x8xf32> to vector<16x8xbf16>
    %16 = vector.extract_strided_slice %0 {offsets = [1, 0, 0], sizes = [1, 8, 8], strides = [1, 1, 1]} : vector<5x8x8xbf16> to vector<1x8x8xbf16>
    %17 = vector.shape_cast %16 : vector<1x8x8xbf16> to vector<8x8xbf16>
    %cst_12 = arith.constant dense<0.000000e+00> : vector<16x8xf32>
    %18 = tpu.matmul %15, %17, %cst_12 {dimension_numbers = #tpu.dot_dimension_numbers<[1], [0], [0], [1], [0, 0, 1, 1], [], []>} : vector<16x8xbf16>, vector<8x8xbf16>, vector<16x8xf32> -> vector<16x8xf32>
    %19 = arith.addf %13, %18 : vector<16x8xf32>
    %20 = vector.extract_strided_slice %6 {offsets = [4, 0], sizes = [16, 8], strides = [1, 1]} : vector<24x8xf32> to vector<16x8xf32>
    %21 = arith.truncf %20 : vector<16x8xf32> to vector<16x8xbf16>
    %22 = vector.extract_strided_slice %0 {offsets = [2, 0, 0], sizes = [1, 8, 8], strides = [1, 1, 1]} : vector<5x8x8xbf16> to vector<1x8x8xbf16>
    %23 = vector.shape_cast %22 : vector<1x8x8xbf16> to vector<8x8xbf16>
    %cst_13 = arith.constant dense<0.000000e+00> : vector<16x8xf32>
    %24 = tpu.matmul %21, %23, %cst_13 {dimension_numbers = #tpu.dot_dimension_numbers<[1], [0], [0], [1], [0, 0, 1, 1], [], []>} : vector<16x8xbf16>, vector<8x8xbf16>, vector<16x8xf32> -> vector<16x8xf32>
    %25 = arith.addf %19, %24 : vector<16x8xf32>
    %26 = vector.extract_strided_slice %6 {offsets = [6, 0], sizes = [16, 8], strides = [1, 1]} : vector<24x8xf32> to vector<16x8xf32>
    %27 = arith.truncf %26 : vector<16x8xf32> to vector<16x8xbf16>
    %28 = vector.extract_strided_slice %0 {offsets = [3, 0, 0], sizes = [1, 8, 8], strides = [1, 1, 1]} : vector<5x8x8xbf16> to vector<1x8x8xbf16>
    %29 = vector.shape_cast %28 : vector<1x8x8xbf16> to vector<8x8xbf16>
    %cst_14 = arith.constant dense<0.000000e+00> : vector<16x8xf32>
    %30 = tpu.matmul %27, %29, %cst_14 {dimension_numbers = #tpu.dot_dimension_numbers<[1], [0], [0], [1], [0, 0, 1, 1], [], []>} : vector<16x8xbf16>, vector<8x8xbf16>, vector<16x8xf32> -> vector<16x8xf32>
    %31 = arith.addf %25, %30 : vector<16x8xf32>
    %32 = vector.extract_strided_slice %6 {offsets = [8, 0], sizes = [16, 8], strides = [1, 1]} : vector<24x8xf32> to vector<16x8xf32>
    %33 = arith.truncf %32 : vector<16x8xf32> to vector<16x8xbf16>
    %34 = vector.extract_strided_slice %0 {offsets = [4, 0, 0], sizes = [1, 8, 8], strides = [1, 1, 1]} : vector<5x8x8xbf16> to vector<1x8x8xbf16>
    %35 = vector.shape_cast %34 : vector<1x8x8xbf16> to vector<8x8xbf16>
    %cst_15 = arith.constant dense<0.000000e+00> : vector<16x8xf32>
    %36 = tpu.matmul %33, %35, %cst_15 {dimension_numbers = #tpu.dot_dimension_numbers<[1], [0], [0], [1], [0, 0, 1, 1], [], []>} : vector<16x8xbf16>, vector<8x8xbf16>, vector<16x8xf32> -> vector<16x8xf32>
    %37 = arith.addf %31, %36 : vector<16x8xf32>
    %c0_16 = arith.constant 0 : index
    %c0_17 = arith.constant 0 : index
    %38 = vector.load %arg3[%c0_16, %c0_17] : memref<1x8xf32, #tpu.memory_space<vmem>>, vector<1x8xf32>
    %39 = vector.broadcast %38 : vector<1x8xf32> to vector<16x8xf32>
    %40 = arith.mulf %37, %39 : vector<16x8xf32>
    %c0_18 = arith.constant 0 : index
    %c0_19 = arith.constant 0 : index
    %41 = vector.load %arg4[%c0_18, %c0_19] : memref<1x8xf32, #tpu.memory_space<vmem>>, vector<1x8xf32>
    %42 = vector.broadcast %41 : vector<1x8xf32> to vector<16x8xf32>
    %43 = arith.addf %40, %42 : vector<16x8xf32>
    %cst_20 = arith.constant 0.000000e+00 : f32
    %44 = vector.broadcast %cst_20 : f32 to vector<16x8xf32>
    %45 = arith.maximumf %43, %44 : vector<16x8xf32>
    %c0_21 = arith.constant 0 : index
    %c0_22 = arith.constant 0 : index
    %c0_23 = arith.constant 0 : index
    %46 = vector.load %arg5[%c0_21, %c0_22, %c0_23] : memref<1x16x8xf32, #tpu.memory_space<vmem>>, vector<1x16x8xf32>
    %47 = vector.shape_cast %46 : vector<1x16x8xf32> to vector<16x8xf32>
    %48 = arith.addf %45, %47 : vector<16x8xf32>
    %cst_24 = arith.constant 0.000000e+00 : f32
    %49 = vector.broadcast %cst_24 : f32 to vector<16x8xf32>
    %50 = arith.maximumf %48, %49 : vector<16x8xf32>
    %c0_25 = arith.constant 0 : index
    %c0_26 = arith.constant 0 : index
    %c0_27 = arith.constant 0 : index
    %51 = vector.load %arg6[%c0_25, %c0_26, %c0_27] : memref<1x16x8xf32, #tpu.memory_space<vmem>>, vector<1x16x8xf32>
    %52 = vector.shape_cast %51 : vector<1x16x8xf32> to vector<16x8xf32>
    %53 = vector.shape_cast %50 : vector<16x8xf32> to vector<1x16x8xf32>
    tpu.vector_store %arg6[%c0_25, %c0_26, %c0_27], %53 {strides = array<i32>} : memref<1x16x8xf32, #tpu.memory_space<vmem>>, vector<1x16x8xf32>,
    return
  }
  func.func @transform_0(%arg0: i32) -> (i32, i32, i32) {
    %c0_i32 = arith.constant 0 : i32
    %c0_i32_0 = arith.constant 0 : i32
    %c0_i32_1 = arith.constant 0 : i32
    return %arg0, %c0_i32, %c0_i32_0 : i32, i32, i32
  }
  func.func @transform_1(%arg0: i32) -> (i32, i32, i32) {
    %c0_i32 = arith.constant 0 : i32
    %c0_i32_0 = arith.constant 0 : i32
    %c0_i32_1 = arith.constant 0 : i32
    %c0_i32_2 = arith.constant 0 : i32
    return %c0_i32, %c0_i32_0, %c0_i32_1 : i32, i32, i32
  }
  func.func @transform_2(%arg0: i32) -> (i32, i32) {
    %c0_i32 = arith.constant 0 : i32
    %c0_i32_0 = arith.constant 0 : i32
    %c0_i32_1 = arith.constant 0 : i32
    return %c0_i32, %c0_i32_0 : i32, i32
  }
  func.func @transform_3(%arg0: i32) -> (i32, i32) {
    %c0_i32 = arith.constant 0 : i32
    %c0_i32_0 = arith.constant 0 : i32
    %c0_i32_1 = arith.constant 0 : i32
    return %c0_i32, %c0_i32_0 : i32, i32
  }
  func.func @transform_4(%arg0: i32) -> (i32, i32, i32) {
    %c0_i32 = arith.constant 0 : i32
    %c0_i32_0 = arith.constant 0 : i32
    %c0_i32_1 = arith.constant 0 : i32
    return %arg0, %c0_i32, %c0_i32_0 : i32, i32, i32
  }
  func.func @transform_5(%arg0: i32) -> (i32, i32, i32) {
    %c0_i32 = arith.constant 0 : i32
    %c0_i32_0 = arith.constant 0 : i32
    %c0_i32_1 = arith.constant 0 : i32
    return %arg0, %c0_i32, %c0_i32_0 : i32, i32, i32
  }
}

module attributes {stable_mosaic.version = 11 : i64} {
  func.func @kernel(%arg0: i32, %arg1: memref<1x16x4xf32, #tpu.memory_space<vmem>>, %arg2: memref<1x4x8xbf16, #tpu.memory_space<vmem>>, %arg3: memref<1x8xf32, #tpu.memory_space<vmem>>, %arg4: memref<1x8xf32, #tpu.memory_space<vmem>>, %arg5: memref<1x16x8xf32, #tpu.memory_space<vmem>>) attributes {dimension_semantics = [#tpu.dimension_semantics<parallel>], iteration_bounds = array<i64: 2>, scalar_prefetch = 0 : i64, scratch_operands = 0 : i64, tpu.core_type = #tpu.core_type<tc>, window_params = [{transform_indices = @transform_0, window_bounds = array<i64: 1, 16, 4>}, {pipeline_mode = #tpu.pipeline_mode<synchronous>, transform_indices = @transform_1, window_bounds = array<i64: 1, 4, 8>}, {pipeline_mode = #tpu.pipeline_mode<synchronous>, transform_indices = @transform_2, window_bounds = array<i64: 1, 8>}, {pipeline_mode = #tpu.pipeline_mode<synchronous>, transform_indices = @transform_3, window_bounds = array<i64: 1, 8>}, {transform_indices = @transform_4, window_bounds = array<i64: 1, 16, 8>}]} {
    %c0 = arith.constant 0 : index
    %c0_0 = arith.constant 0 : index
    %c0_1 = arith.constant 0 : index
    %0 = vector.load %arg2[%c0, %c0_0, %c0_1] : memref<1x4x8xbf16, #tpu.memory_space<vmem>>, vector<1x4x8xbf16>
    %c0_2 = arith.constant 0 : index
    %c0_3 = arith.constant 0 : index
    %c0_4 = arith.constant 0 : index
    %1 = vector.load %arg1[%c0_2, %c0_3, %c0_4] : memref<1x16x4xf32, #tpu.memory_space<vmem>>, vector<1x16x4xf32>
    %2 = vector.shape_cast %1 : vector<1x16x4xf32> to vector<16x4xf32>
    %cst = arith.constant 0.000000e+00 : f32
    %3 = vector.broadcast %cst : f32 to vector<16x8xf32>
    %4 = arith.truncf %2 : vector<16x4xf32> to vector<16x4xbf16>
    %5 = vector.shape_cast %0 : vector<1x4x8xbf16> to vector<4x8xbf16>
    %cst_5 = arith.constant dense<0.000000e+00> : vector<16x8xf32>
    %6 = tpu.matmul %4, %5, %cst_5 {dimension_numbers = #tpu.dot_dimension_numbers<[1], [0], [0], [1], [0, 0, 1, 1], [], []>} : vector<16x4xbf16>, vector<4x8xbf16>, vector<16x8xf32> -> vector<16x8xf32>
    %7 = arith.addf %3, %6 : vector<16x8xf32>
    %c0_6 = arith.constant 0 : index
    %c0_7 = arith.constant 0 : index
    %8 = vector.load %arg3[%c0_6, %c0_7] : memref<1x8xf32, #tpu.memory_space<vmem>>, vector<1x8xf32>
    %9 = vector.broadcast %8 : vector<1x8xf32> to vector<16x8xf32>
    %10 = arith.mulf %7, %9 : vector<16x8xf32>
    %c0_8 = arith.constant 0 : index
    %c0_9 = arith.constant 0 : index
    %11 = vector.load %arg4[%c0_8, %c0_9] : memref<1x8xf32, #tpu.memory_space<vmem>>, vector<1x8xf32>
    %12 = vector.broadcast %11 : vector<1x8xf32> to vector<16x8xf32>
    %13 = arith.addf %10, %12 : vector<16x8xf32>
    %c0_10 = arith.constant 0 : index
    %c0_11 = arith.constant 0 : index
    %c0_12 = arith.constant 0 : index
    %14 = vector.load %arg5[%c0_10, %c0_11, %c0_12] : memref<1x16x8xf32, #tpu.memory_space<vmem>>, vector<1x16x8xf32>
    %15 = vector.shape_cast %14 : vector<1x16x8xf32> to vector<16x8xf32>
    %16 = vector.shape_cast %13 : vector<16x8xf32> to vector<1x16x8xf32>
    tpu.vector_store %arg5[%c0_10, %c0_11, %c0_12], %16 {strides = array<i32>} : memref<1x16x8xf32, #tpu.memory_space<vmem>>, vector<1x16x8xf32>,
    return
  }
  func.func @transform_0(%arg0: i32) -> (i32, i32, i32) {
    %c0_i32 = arith.constant 0 : i32
    %c0_i32_0 = arith.constant 0 : i32
    %c0_i32_1 = arith.constant 0 : i32
    return %arg0, %c0_i32, %c0_i32_0 : i32, i32, i32
  }
  func.func @transform_1(%arg0: i32) -> (i32, i32, i32) {
    %c0_i32 = arith.constant 0 : i32
    %c0_i32_0 = arith.constant 0 : i32
    %c0_i32_1 = arith.constant 0 : i32
    %c0_i32_2 = arith.constant 0 : i32
    return %c0_i32, %c0_i32_0, %c0_i32_1 : i32, i32, i32
  }
  func.func @transform_2(%arg0: i32) -> (i32, i32) {
    %c0_i32 = arith.constant 0 : i32
    %c0_i32_0 = arith.constant 0 : i32
    %c0_i32_1 = arith.constant 0 : i32
    return %c0_i32, %c0_i32_0 : i32, i32
  }
  func.func @transform_3(%arg0: i32) -> (i32, i32) {
    %c0_i32 = arith.constant 0 : i32
    %c0_i32_0 = arith.constant 0 : i32
    %c0_i32_1 = arith.constant 0 : i32
    return %c0_i32, %c0_i32_0 : i32, i32
  }
  func.func @transform_4(%arg0: i32) -> (i32, i32, i32) {
    %c0_i32 = arith.constant 0 : i32
    %c0_i32_0 = arith.constant 0 : i32
    %c0_i32_1 = arith.constant 0 : i32
    return %arg0, %c0_i32, %c0_i32_0 : i32, i32, i32
  }
}

module attributes {stable_mosaic.version = 11 : i64} {
  func.func @kernel(%arg0: i32, %arg1: memref<1x16x4xf32, #tpu.memory_space<vmem>>, %arg2: memref<5x4x8xbf16, #tpu.memory_space<vmem>>, %arg3: memref<1x8xf32, #tpu.memory_space<vmem>>, %arg4: memref<1x8xf32, #tpu.memory_space<vmem>>, %arg5: memref<1x16x8xf32, #tpu.memory_space<vmem>>, %arg6: memref<24x4xf32, #tpu.memory_space<vmem>>) attributes {dimension_semantics = [#tpu.dimension_semantics<parallel>], iteration_bounds = array<i64: 2>, scalar_prefetch = 0 : i64, scratch_operands = 1 : i64, tpu.core_type = #tpu.core_type<tc>, window_params = [{transform_indices = @transform_0, window_bounds = array<i64: 1, 16, 4>}, {pipeline_mode = #tpu.pipeline_mode<synchronous>, transform_indices = @transform_1, window_bounds = array<i64: 5, 4, 8>}, {pipeline_mode = #tpu.pipeline_mode<synchronous>, transform_indices = @transform_2, window_bounds = array<i64: 1, 8>}, {pipeline_mode = #tpu.pipeline_mode<synchronous>, transform_indices = @transform_3, window_bounds = array<i64: 1, 8>}, {transform_indices = @transform_4, window_bounds = array<i64: 1, 16, 8>}]} {
    %c0 = arith.constant 0 : index
    %c0_0 = arith.constant 0 : index
    %c0_1 = arith.constant 0 : index
    %0 = vector.load %arg2[%c0, %c0_0, %c0_1] : memref<5x4x8xbf16, #tpu.memory_space<vmem>>, vector<5x4x8xbf16>
    %cst = arith.constant 0.000000e+00 : f32
    %1 = vector.broadcast %cst : f32 to vector<24x4xf32>
    %c0_2 = arith.constant 0 : index
    %c0_3 = arith.constant 0 : index
    %2 = vector.load %arg6[%c0_2, %c0_3] : memref<24x4xf32, #tpu.memory_space<vmem>>, vector<24x4xf32>
    tpu.vector_store %arg6[%c0_2, %c0_3], %1 {strides = array<i32>} : memref<24x4xf32, #tpu.memory_space<vmem>>, vector<24x4xf32>,
    %c0_4 = arith.constant 0 : index
    %c0_5 = arith.constant 0 : index
    %c0_6 = arith.constant 0 : index
    %3 = vector.load %arg1[%c0_4, %c0_5, %c0_6] : memref<1x16x4xf32, #tpu.memory_space<vmem>>, vector<1x16x4xf32>
    %4 = vector.shape_cast %3 : vector<1x16x4xf32> to vector<16x4xf32>
    %c4 = arith.constant 4 : index
    %c0_7 = arith.constant 0 : index
    %5 = vector.load %arg6[%c4, %c0_7] : memref<24x4xf32, #tpu.memory_space<vmem>>, vector<16x4xf32>
    tpu.vector_store %arg6[%c4, %c0_7], %4 {strides = array<i32>} : memref<24x4xf32, #tpu.memory_space<vmem>>, vector<16x4xf32>,
    %c0_8 = arith.constant 0 : index
    %c0_9 = arith.constant 0 : index
    %6 = vector.load %arg6[%c0_8, %c0_9] : memref<24x4xf32, #tpu.memory_space<vmem>>, vector<24x4xf32>
    %cst_10 = arith.constant 0.000000e+00 : f32
    %7 = vector.broadcast %cst_10 : f32 to vector<16x8xf32>
    %8 = vector.extract_strided_slice %6 {offsets = [0, 0], sizes = [16, 4], strides = [1, 1]} : vector<24x4xf32> to vector<16x4xf32>
    %9 = arith.truncf %8 : vector<16x4xf32> to vector<16x4xbf16>
    %10 = vector.extract_strided_slice %0 {offsets = [0, 0, 0], sizes = [1, 4, 8], strides = [1, 1, 1]} : vector<5x4x8xbf16> to vector<1x4x8xbf16>
    %11 = vector.shape_cast %10 : vector<1x4x8xbf16> to vector<4x8xbf16>
    %cst_11 = arith.constant dense<0.000000e+00> : vector<16x8xf32>
    %12 = tpu.matmul %9, %11, %cst_11 {dimension_numbers = #tpu.dot_dimension_numbers<[1], [0], [0], [1], [0, 0, 1, 1], [], []>} : vector<16x4xbf16>, vector<4x8xbf16>, vector<16x8xf32> -> vector<16x8xf32>
    %13 = arith.addf %7, %12 : vector<16x8xf32>
    %14 = vector.extract_strided_slice %6 {offsets = [2, 0], sizes = [16, 4], strides = [1, 1]} : vector<24x4xf32> to vector<16x4xf32>
    %15 = arith.truncf %14 : vector<16x4xf32> to vector<16x4xbf16>
    %16 = vector.extract_strided_slice %0 {offsets = [1, 0, 0], sizes = [1, 4, 8], strides = [1, 1, 1]} : vector<5x4x8xbf16> to vector<1x4x8xbf16>
    %17 = vector.shape_cast %16 : vector<1x4x8xbf16> to vector<4x8xbf16>
    %cst_12 = arith.constant dense<0.000000e+00> : vector<16x8xf32>
    %18 = tpu.matmul %15, %17, %cst_12 {dimension_numbers = #tpu.dot_dimension_numbers<[1], [0], [0], [1], [0, 0, 1, 1], [], []>} : vector<16x4xbf16>, vector<4x8xbf16>, vector<16x8xf32> -> vector<16x8xf32>
    %19 = arith.addf %13, %18 : vector<16x8xf32>
    %20 = vector.extract_strided_slice %6 {offsets = [4, 0], sizes = [16, 4], strides = [1, 1]} : vector<24x4xf32> to vector<16x4xf32>
    %21 = arith.truncf %20 : vector<16x4xf32> to vector<16x4xbf16>
    %22 = vector.extract_strided_slice %0 {offsets = [2, 0, 0], sizes = [1, 4, 8], strides = [1, 1, 1]} : vector<5x4x8xbf16> to vector<1x4x8xbf16>
    %23 = vector.shape_cast %22 : vector<1x4x8xbf16> to vector<4x8xbf16>
    %cst_13 = arith.constant dense<0.000000e+00> : vector<16x8xf32>
    %24 = tpu.matmul %21, %23, %cst_13 {dimension_numbers = #tpu.dot_dimension_numbers<[1], [0], [0], [1], [0, 0, 1, 1], [], []>} : vector<16x4xbf16>, vector<4x8xbf16>, vector<16x8xf32> -> vector<16x8xf32>
    %25 = arith.addf %19, %24 : vector<16x8xf32>
    %26 = vector.extract_strided_slice %6 {offsets = [6, 0], sizes = [16, 4], strides = [1, 1]} : vector<24x4xf32> to vector<16x4xf32>
    %27 = arith.truncf %26 : vector<16x4xf32> to vector<16x4xbf16>
    %28 = vector.extract_strided_slice %0 {offsets = [3, 0, 0], sizes = [1, 4, 8], strides = [1, 1, 1]} : vector<5x4x8xbf16> to vector<1x4x8xbf16>
    %29 = vector.shape_cast %28 : vector<1x4x8xbf16> to vector<4x8xbf16>
    %cst_14 = arith.constant dense<0.000000e+00> : vector<16x8xf32>
    %30 = tpu.matmul %27, %29, %cst_14 {dimension_numbers = #tpu.dot_dimension_numbers<[1], [0], [0], [1], [0, 0, 1, 1], [], []>} : vector<16x4xbf16>, vector<4x8xbf16>, vector<16x8xf32> -> vector<16x8xf32>
    %31 = arith.addf %25, %30 : vector<16x8xf32>
    %32 = vector.extract_strided_slice %6 {offsets = [8, 0], sizes = [16, 4], strides = [1, 1]} : vector<24x4xf32> to vector<16x4xf32>
    %33 = arith.truncf %32 : vector<16x4xf32> to vector<16x4xbf16>
    %34 = vector.extract_strided_slice %0 {offsets = [4, 0, 0], sizes = [1, 4, 8], strides = [1, 1, 1]} : vector<5x4x8xbf16> to vector<1x4x8xbf16>
    %35 = vector.shape_cast %34 : vector<1x4x8xbf16> to vector<4x8xbf16>
    %cst_15 = arith.constant dense<0.000000e+00> : vector<16x8xf32>
    %36 = tpu.matmul %33, %35, %cst_15 {dimension_numbers = #tpu.dot_dimension_numbers<[1], [0], [0], [1], [0, 0, 1, 1], [], []>} : vector<16x4xbf16>, vector<4x8xbf16>, vector<16x8xf32> -> vector<16x8xf32>
    %37 = arith.addf %31, %36 : vector<16x8xf32>
    %c0_16 = arith.constant 0 : index
    %c0_17 = arith.constant 0 : index
    %38 = vector.load %arg3[%c0_16, %c0_17] : memref<1x8xf32, #tpu.memory_space<vmem>>, vector<1x8xf32>
    %39 = vector.broadcast %38 : vector<1x8xf32> to vector<16x8xf32>
    %40 = arith.mulf %37, %39 : vector<16x8xf32>
    %c0_18 = arith.constant 0 : index
    %c0_19 = arith.constant 0 : index
    %41 = vector.load %arg4[%c0_18, %c0_19] : memref<1x8xf32, #tpu.memory_space<vmem>>, vector<1x8xf32>
    %42 = vector.broadcast %41 : vector<1x8xf32> to vector<16x8xf32>
    %43 = arith.addf %40, %42 : vector<16x8xf32>
    %cst_20 = arith.constant 0.000000e+00 : f32
    %44 = vector.broadcast %cst_20 : f32 to vector<16x8xf32>
    %45 = arith.maximumf %43, %44 : vector<16x8xf32>
    %c0_21 = arith.constant 0 : index
    %c0_22 = arith.constant 0 : index
    %c0_23 = arith.constant 0 : index
    %46 = vector.load %arg5[%c0_21, %c0_22, %c0_23] : memref<1x16x8xf32, #tpu.memory_space<vmem>>, vector<1x16x8xf32>
    %47 = vector.shape_cast %46 : vector<1x16x8xf32> to vector<16x8xf32>
    %48 = vector.shape_cast %45 : vector<16x8xf32> to vector<1x16x8xf32>
    tpu.vector_store %arg5[%c0_21, %c0_22, %c0_23], %48 {strides = array<i32>} : memref<1x16x8xf32, #tpu.memory_space<vmem>>, vector<1x16x8xf32>,
    return
  }
  func.func @transform_0(%arg0: i32) -> (i32, i32, i32) {
    %c0_i32 = arith.constant 0 : i32
    %c0_i32_0 = arith.constant 0 : i32
    %c0_i32_1 = arith.constant 0 : i32
    return %arg0, %c0_i32, %c0_i32_0 : i32, i32, i32
  }
  func.func @transform_1(%arg0: i32) -> (i32, i32, i32) {
    %c0_i32 = arith.constant 0 : i32
    %c0_i32_0 = arith.constant 0 : i32
    %c0_i32_1 = arith.constant 0 : i32
    %c0_i32_2 = arith.constant 0 : i32
    return %c0_i32, %c0_i32_0, %c0_i32_1 : i32, i32, i32
  }
  func.func @transform_2(%arg0: i32) -> (i32, i32) {
    %c0_i32 = arith.constant 0 : i32
    %c0_i32_0 = arith.constant 0 : i32
    %c0_i32_1 = arith.constant 0 : i32
    return %c0_i32, %c0_i32_0 : i32, i32
  }
  func.func @transform_3(%arg0: i32) -> (i32, i32) {
    %c0_i32 = arith.constant 0 : i32
    %c0_i32_0 = arith.constant 0 : i32
    %c0_i32_1 = arith.constant 0 : i32
    return %c0_i32, %c0_i32_0 : i32, i32
  }
  func.func @transform_4(%arg0: i32) -> (i32, i32, i32) {
    %c0_i32 = arith.constant 0 : i32
    %c0_i32_0 = arith.constant 0 : i32
    %c0_i32_1 = arith.constant 0 : i32
    return %arg0, %c0_i32, %c0_i32_0 : i32, i32, i32
  }
}

</mosaic_0001>

<llo_original>
// kernel: _lambda_.5
$region0: #{_lambda_.5}
  #allocation0 [shape = 'u32[]', space=smem, size = 0x4, offset = 0x4, fixed_abs, tag = 'smem constant byte address 0x4 - core index']
  #allocation1 [shape = 'u32[144,128]{1,0:T(1,128)}', space=vmem, size = 0x12000, scoped, tag = 'internal scratch']
  #allocation2 [shape = 'f32[24,8]{1,0:T(8,128)}', space=vmem, size = 0x3000, scoped, tag = 'scratch operand']
  %s0 = inlined_call_operand.vmem [shape: f32[2,16,8], index: 0, kind: input, shape index: {}]
  %s1 = inlined_call_operand.vmem [shape: bf16[5,8,8], index: 1, kind: input, shape index: {}]
  %s2 = inlined_call_operand.vmem [shape: f32[1,8], index: 2, kind: input, shape index: {}]
  %s3 = inlined_call_operand.vmem [shape: f32[1,8], index: 3, kind: input, shape index: {}]
  %s4 = inlined_call_operand.vmem [shape: f32[2,16,8], index: 4, kind: input, shape index: {}]
  %s5 = inlined_call_operand.vmem [shape: f32[2,16,8], index: 5, kind: output, shape index: {}]
  %s6 = sld [smem:[#allocation0]]
  $region53: #{_lambda_.5} parent=0
    _
  %s8 = ssub.s32 1, %s6
  %s9 = scalar_select 0, %s8, %s6
  loop: start=0, step=1, limit=4
  $region2: #{_lambda_.5} parent=0 // loop_pre_header
    _
  $region3: #{_lambda_.5} parent=0 // loop_header
    %s11 = sphi 0, %s15
    %p12 = scmp.ge.s32.totalorder %s11, 4
    %s21 = sphi 0, %s23
    %s24 = sphi 0, %s21
    %s25 = sphi 0, %s24
    %s41 = sphi 0, %s25
    %s45 = sphi 0, %s45
    %s47 = sphi 0, %s45
    %s48 = sphi 0, %s47
    %s62 = sphi 0, %s48
    %s66 = sphi 0, %s66
    %s68 = sphi 0, %s66
    %s69 = sphi 0, %s68
    %s83 = sphi 0, %s69
    %s87 = sphi 0, %s87
    %s89 = sphi 0, %s87
    %s90 = sphi 0, %s89
    %s104 = sphi 0, %s90
    %s110 = sphi 0, %s112
    %s113 = sphi 0, %s110
    %s114 = sphi 0, %s113
    %s130 = sphi 0, %s114
    %s136 = sphi 0, %s138
    %s139 = sphi 0, %s136
    %s140 = sphi 0, %s139
    %s156 = sphi 0, %s140
  $region4: #{_lambda_.5} parent=0 // loop_header_branch
    %14 = sbr.rel (%p12) target = $region8
  $region5: #{_lambda_.5} parent=0 // loop_body
    %s16 = ssub.s32 %s11, 1
    %s17 = ssub.s32 %s11, 2
    %s18 = sadd.s32 %s11, 1
    %s19 = ssub.s32 %s11, %s18
    %p20 = scmp.eq.s32.totalorder %s19, 0
    %s22 = sadd.s32 %s21, 1
    %s23 = scalar_select %p20, %s21, %s22
    %p26 = pneg %p20
    %p27 = scmp.eq.s32.totalorder %s11, 1
    %p28 = por %p26, %p27
    %p29 = scmp.ne.s32.totalorder %s21, %s24
    %p30 = scmp.eq.s32.totalorder %s11, 0
    %p31 = por %p29, %p30
    %p32 = scmp.ne.s32.totalorder %s21, %s24
    %p33 = scmp.eq.s32.totalorder %s16, 1
    %p34 = por %p32, %p33
    %p35 = scmp.ne.s32.totalorder %s24, %s25
    %p36 = scmp.eq.s32.totalorder %s16, 0
    %p37 = por %p35, %p36
    %p38 = scmp.ne.s32.totalorder %s24, %s25
    %p39 = scmp.eq.s32.totalorder %s17, 1
    %p40 = por %p38, %p39
    %p42 = scmp.ne.s32.totalorder %s25, %s41
    %p43 = scmp.eq.s32.totalorder %s17, 0
    %p44 = por %p42, %p43
    %s46 = sadd.s32 %s45, 1
    %p49 = scmp.eq.s32.totalorder %s11, 1
    %p50 = scmp.ne.s32.totalorder %s45, %s47
    %p51 = scmp.eq.s32.totalorder %s11, 0
    %p52 = por %p50, %p51
    %p53 = scmp.ne.s32.totalorder %s45, %s47
    %p54 = scmp.eq.s32.totalorder %s16, 1
    %p55 = por %p53, %p54
    %p56 = scmp.ne.s32.totalorder %s47, %s48
    %p57 = scmp.eq.s32.totalorder %s16, 0
    %p58 = por %p56, %p57
    %p59 = scmp.ne.s32.totalorder %s47, %s48
    %p60 = scmp.eq.s32.totalorder %s17, 1
    %p61 = por %p59, %p60
    %p63 = scmp.ne.s32.totalorder %s48, %s62
    %p64 = scmp.eq.s32.totalorder %s17, 0
    %p65 = por %p63, %p64
    %s67 = sadd.s32 %s66, 1
    %p70 = scmp.eq.s32.totalorder %s11, 1
    %p71 = scmp.ne.s32.totalorder %s66, %s68
    %p72 = scmp.eq.s32.totalorder %s11, 0
    %p73 = por %p71, %p72
    %p74 = scmp.ne.s32.totalorder %s66, %s68
    %p75 = scmp.eq.s32.totalorder %s16, 1
    %p76 = por %p74, %p75
    %p77 = scmp.ne.s32.totalorder %s68, %s69
    %p78 = scmp.eq.s32.totalorder %s16, 0
    %p79 = por %p77, %p78
    %p80 = scmp.ne.s32.totalorder %s68, %s69
    %p81 = scmp.eq.s32.totalorder %s17, 1
    %p82 = por %p80, %p81
    %p84 = scmp.ne.s32.totalorder %s69, %s83
    %p85 = scmp.eq.s32.totalorder %s17, 0
    %p86 = por %p84, %p85
    %s88 = sadd.s32 %s87, 1
    %p91 = scmp.eq.s32.totalorder %s11, 1
    %p92 = scmp.ne.s32.totalorder %s87, %s89
    %p93 = scmp.eq.s32.totalorder %s11, 0
    %p94 = por %p92, %p93
    %p95 = scmp.ne.s32.totalorder %s87, %s89
    %p96 = scmp.eq.s32.totalorder %s16, 1
    %p97 = por %p95, %p96
    %p98 = scmp.ne.s32.totalorder %s89, %s90
    %p99 = scmp.eq.s32.totalorder %s16, 0
    %p100 = por %p98, %p99
    %p101 = scmp.ne.s32.totalorder %s89, %s90
    %p102 = scmp.eq.s32.totalorder %s17, 1
    %p103 = por %p101, %p102
    %p105 = scmp.ne.s32.totalorder %s90, %s104
    %p106 = scmp.eq.s32.totalorder %s17, 0
    %p107 = por %p105, %p106
    %s108 = ssub.s32 %s11, %s18
    %p109 = scmp.eq.s32.totalorder %s108, 0
    %s111 = sadd.s32 %s110, 1
    %s112 = scalar_select %p109, %s110, %s111
    %p115 = pneg %p109
    %p116 = scmp.eq.s32.totalorder %s11, 1
    %p117 = por %p115, %p116
    %p118 = scmp.ne.s32.totalorder %s110, %s113
    %p119 = scmp.eq.s32.totalorder %s11, 0
    %p120 = por %p118, %p119
    %p121 = scmp.ne.s32.totalorder %s110, %s113
    %p122 = scmp.eq.s32.totalorder %s16, 1
    %p123 = por %p121, %p122
    %p124 = scmp.ne.s32.totalorder %s113, %s114
    %p125 = scmp.eq.s32.totalorder %s16, 0
    %p126 = por %p124, %p125
    %p127 = scmp.ne.s32.totalorder %s113, %s114
    %p128 = scmp.eq.s32.totalorder %s17, 1
    %p129 = por %p127, %p128
    %p131 = scmp.ne.s32.totalorder %s114, %s130
    %p132 = scmp.eq.s32.totalorder %s17, 0
    %p133 = por %p131, %p132
    %s134 = ssub.s32 %s11, %s18
    %p135 = scmp.eq.s32.totalorder %s134, 0
    %s137 = sadd.s32 %s136, 1
    %s138 = scalar_select %p135, %s136, %s137
    %p141 = pneg %p135
    %p142 = scmp.eq.s32.totalorder %s11, 1
    %p143 = por %p141, %p142
    %p144 = scmp.ne.s32.totalorder %s136, %s139
    %p145 = scmp.eq.s32.totalorder %s11, 0
    %p146 = por %p144, %p145
    %p147 = scmp.ne.s32.totalorder %s136, %s139
    %p148 = scmp.eq.s32.totalorder %s16, 1
    %p149 = por %p147, %p148
    %p150 = scmp.ne.s32.totalorder %s139, %s140
    %p151 = scmp.eq.s32.totalorder %s16, 0
    %p152 = por %p150, %p151
    %p153 = scmp.ne.s32.totalorder %s139, %s140
    %p154 = scmp.eq.s32.totalorder %s17, 1
    %p155 = por %p153, %p154
    %p157 = scmp.ne.s32.totalorder %s140, %s156
    %p158 = scmp.eq.s32.totalorder %s17, 0
    %p159 = por %p157, %p158
    %p160 = scmp.le.s32.totalorder 1, %s11
    %p161 = scmp.lt.s32.totalorder %s11, 3
    %p162 = pnand %p160, %p161
    %p163 = pneg %p162
    // Predicated region
    $region9: #{_lambda_.5} parent=5 // pred_check
      _
    $region10: #{_lambda_.5} parent=5 // pred_check_branch
      %165 = sbr.rel (%p162) target = $region12
    $region11: #{_lambda_.5} parent=5 // pred_region
      %s166 = ssub.s32 %s11, 1
      // Predicated region
      $region13: #{_lambda_.5} parent=11 // pred_check
        %p167 = pneg %p58
      $region14: #{_lambda_.5} parent=11 // pred_check_branch
        %169 = sbr.rel (%p167) target = $region16
      $region15: #{_lambda_.5} parent=11 // pred_region
        _
      $region16: #{_lambda_.5} parent=11 // pred_fallthru
        _
      // Predicated region
      $region17: #{_lambda_.5} parent=11 // pred_check
        %p170 = pneg %p79
      $region18: #{_lambda_.5} parent=11 // pred_check_branch
        %172 = sbr.rel (%p170) target = $region20
      $region19: #{_lambda_.5} parent=11 // pred_region
        _
      $region20: #{_lambda_.5} parent=11 // pred_fallthru
        _
      // Predicated region
      $region21: #{_lambda_.5} parent=11 // pred_check
        %p173 = pneg %p100
      $region22: #{_lambda_.5} parent=11 // pred_check_branch
        %175 = sbr.rel (%p173) target = $region24
      $region23: #{_lambda_.5} parent=11 // pred_region
        _
      $region24: #{_lambda_.5} parent=11 // pred_fallthru
        _
    $region12: #{_lambda_.5} parent=5 // pred_fallthru
      _
    %p176 = scmp.lt.s32.totalorder %s11, 2
    // Predicated region
    $region25: #{_lambda_.5} parent=5 // pred_check
      %p177 = pneg %p176
    $region26: #{_lambda_.5} parent=5 // pred_check_branch
      %179 = sbr.rel (%p177) target = $region28
    $region27: #{_lambda_.5} parent=5 // pred_region
      // Predicated region
      $region29: #{_lambda_.5} parent=27 // pred_check
        %p180 = pneg %p31
      $region30: #{_lambda_.5} parent=27 // pred_check_branch
        %182 = sbr.rel (%p180) target = $region32
      $region31: #{_lambda_.5} parent=27 // pred_region
        %p183 = scmp.lt.s32.totalorder %s11, 1
        %s184 = scalar_select %p183, %s11, 1
        %s185 = smul.addr %s184, 2
        %s186 = smul.addr %s185, 8
        %s187 = scalar_lea.vmem %s0, %s186
      $region32: #{_lambda_.5} parent=27 // pred_fallthru
        _
      // Predicated region
      $region33: #{_lambda_.5} parent=27 // pred_check
        %p188 = pneg %p120
      $region34: #{_lambda_.5} parent=27 // pred_check_branch
        %190 = sbr.rel (%p188) target = $region36
      $region35: #{_lambda_.5} parent=27 // pred_region
        %p191 = scmp.lt.s32.totalorder %s11, 1
        %s192 = scalar_select %p191, %s11, 1
        %s193 = smul.addr %s192, 2
        %s194 = smul.addr %s193, 8
        %s195 = scalar_lea.vmem %s4, %s194
      $region36: #{_lambda_.5} parent=27 // pred_fallthru
        _
    $region28: #{_lambda_.5} parent=5 // pred_fallthru
      _
    %p196 = scmp.le.s32.totalorder 1, %s11
    %p197 = scmp.lt.s32.totalorder %s11, 3
    %p198 = pnand %p196, %p197
    %p199 = pneg %p198
    // Predicated region
    $region37: #{_lambda_.5} parent=5 // pred_check
      _
    $region38: #{_lambda_.5} parent=5 // pred_check_branch
      %201 = sbr.rel (%p198) target = $region40
    $region39: #{_lambda_.5} parent=5 // pred_region
      %s202 = ssub.s32 %s11, 1
      %p203 = scmp.lt.s32.totalorder %s16, 1
      %s204 = scalar_select %p203, %s16, 1
      %s205 = smul.addr %s204, 2
      %s206 = smul.addr %s205, 8
      %s207 = scalar_lea.vmem %s0, %s206
      %p208 = pneg %p37
      %p209 = pneg %p34
      %p210 = pneg %p58
      %p211 = pneg %p55
      %p212 = pneg %p79
      %p213 = pneg %p76
      %p214 = pneg %p100
      %p215 = pneg %p97
      %p216 = scmp.lt.s32.totalorder %s16, 1
      %s217 = scalar_select %p216, %s16, 1
      %s218 = smul.addr %s217, 2
      %s219 = smul.addr %s218, 8
      %s220 = scalar_lea.vmem %s4, %s219
      %p221 = pneg %p126
      %p222 = pneg %p123
      %p223 = pneg %p152
      %p224 = pneg %p149
      %p225 = scmp.lt.s32.totalorder %s16, 1
      %s226 = scalar_select %p225, %s16, 1
      %s227 = smul.addr %s226, 2
      %s228 = smul.addr %s227, 8
      %s229 = scalar_lea.vmem %s5, %s228
      %p230 = scmp.lt.s32.totalorder %s16, 1
      %s231 = scalar_select %p230, %s16, 1
      %s232 = smul.addr %s231, 2
      %s233 = smul.addr %s232, 8
      %s234 = scalar_lea.vmem %s0, %s233
      %p235 = scmp.lt.s32.totalorder %s16, 1
      %s236 = scalar_select %p235, %s16, 1
      %s237 = smul.addr %s236, 2
      %s238 = smul.addr %s237, 8
      %s239 = scalar_lea.vmem %s4, %s238
      %p240 = scmp.lt.s32.totalorder %s16, 1
      %s241 = scalar_select %p240, %s16, 1
      %s242 = smul.addr %s241, 2
      %s243 = smul.addr %s242, 8
      %s244 = scalar_lea.vmem %s5, %s243
      %v246 = vld [vmem:[%s1] sm:$0xf]
      %v247 = vld [vmem:[%s1 + $0x4] sm:$0xf]
      %v248 = vld [vmem:[%s1 + $0x8] sm:$0xf]
      %v249 = vld [vmem:[%s1 + $0xc] sm:$0xf]
      %v250 = vld [vmem:[%s1 + $0x10] sm:$0xf]
      %vm251 = vcmask 64512
      %252 = vst.msk [vmem:[#allocation2] sm:$0xff] %vm251, 0.0
      %253 = vst.msk [vmem:[#allocation2 + $0x8] sm:$0xff] %vm251, 0.0
      %254 = vst.msk [vmem:[#allocation2 + $0x10] sm:$0xff] %vm251, 0.0
      %v255 = vld [vmem:[%s234] sm:$0xff]
      %v256 = vld [vmem:[%s234 + $0x8] sm:$0xff]
      %257 = vst.msk [vmem:[#allocation2 + $0x4] sm:$0xff] %vm251, %v255
      %258 = vst.msk [vmem:[#allocation2 + $0xc] sm:$0xff] %vm251, %v256
      %v259 = vld [vmem:[#allocation2] sm:$0xff]
      %v260 = vld [vmem:[#allocation2 + $0x8] sm:$0xff]
      %v261 = vld [vmem:[#allocation2 + $0x10] sm:$0xff]
      %v262 = vpack.c.bf16 %v260, %v259
      %v263 = vpack.c.bf16 %v261, %v261
      %vm266 = vcmask 1046528
      %v267 = vrot.slane %v262, 1
      %v268 = vrot.slane %v263, 1
      %v269 = vsel %vm266, %v267, %v268
      %v271 = vsel %vm251, %v269, 0
      %vm273 = vcmask 1043456
      %v275 = vsel %vm273, %v247, 0
      %277 = vmatprep.subr.bf16.mxu0 0
      %278 = vmatpush1.bf16.msra.mxu0 %v275
      %279 = vmatprep.subr.bf16.mxu0 0
      %280 = vmatpush1.bf16.msra.mxu0 0
      %281 = vmatprep.subr.bf16.mxu0 0
      %282 = vmatpush1.bf16.msra.mxu0 0
      %283 = vmatprep.subr.bf16.mxu0 0
      %284 = vmatpush1.bf16.msra.mxu0 0
      %285 = vmatprep.subr.bf16.mxu0 0
      %286 = vmatpush1.bf16.msra.mxu0 0
      %287 = vmatprep.subr.bf16.mxu0 0
      %288 = vmatpush1.bf16.msra.mxu0 0
      %289 = vmatprep.subr.bf16.mxu0 0
      %290 = vmatpush1.bf16.msra.mxu0 0
      %291 = vmatprep.subr.bf16.mxu0 0
      %292 = vmatpush1.bf16.msra.mxu0 0
      %293 = vmatprep.subr.bf16.mxu0 0
      %294 = vmatpush1.bf16.msra.mxu0 0
      %295 = vmatprep.subr.bf16.mxu0 0
      %296 = vmatpush1.bf16.msra.mxu0 0
      %297 = vmatprep.subr.bf16.mxu0 0
      %298 = vmatpush1.bf16.msra.mxu0 0
      %299 = vmatprep.subr.bf16.mxu0 0
      %300 = vmatpush1.bf16.msra.mxu0 0
      %301 = vmatprep.subr.bf16.mxu0 0
      %302 = vmatpush1.bf16.msra.mxu0 0
      %303 = vmatprep.subr.bf16.mxu0 0
      %304 = vmatpush1.bf16.msra.mxu0 0
      %305 = vmatprep.subr.bf16.mxu0 0
      %306 = vmatpush1.bf16.msra.mxu0 0
      %307 = vmatprep.subr.bf16.mxu0 0
      %308 = vmatpush1.bf16.msra.mxu0 0
      %309 = vmatprep.mubr.bf16.mxu0 0
      %310 = vmatmul.mubr.bf16.gmra.mrb[0].mxu0 %v271
      %v311 = vpop.f32.mrb[0].mxu0
      %v312 = vadd.f32 0.0, %v311
      %v313 = vpop.f32.mrb[0].mxu0
      %v314 = vpop.f32.mrb[0].mxu0
      %v315 = vadd.f32 0.0, %v314
      %v316 = vpop.f32.mrb[0].mxu0
      %317 = vdwg.mxu0
      %v319 = vsel %vm251, %v262, 0
      %v322 = vsel %vm273, %v246, 0
      %324 = vmatprep.subr.bf16.mxu0 0
      %325 = vmatpush1.bf16.msra.mxu0 %v322
      %326 = vmatprep.subr.bf16.mxu0 0
      %327 = vmatpush1.bf16.msra.mxu0 0
      %328 = vmatprep.subr.bf16.mxu0 0
      %329 = vmatpush1.bf16.msra.mxu0 0
      %330 = vmatprep.subr.bf16.mxu0 0
      %331 = vmatpush1.bf16.msra.mxu0 0
      %332 = vmatprep.subr.bf16.mxu0 0
      %333 = vmatpush1.bf16.msra.mxu0 0
      %334 = vmatprep.subr.bf16.mxu0 0
      %335 = vmatpush1.bf16.msra.mxu0 0
      %336 = vmatprep.subr.bf16.mxu0 0
      %337 = vmatpush1.bf16.msra.mxu0 0
      %338 = vmatprep.subr.bf16.mxu0 0
      %339 = vmatpush1.bf16.msra.mxu0 0
      %340 = vmatprep.subr.bf16.mxu0 0
      %341 = vmatpush1.bf16.msra.mxu0 0
      %342 = vmatprep.subr.bf16.mxu0 0
      %343 = vmatpush1.bf16.msra.mxu0 0
      %344 = vmatprep.subr.bf16.mxu0 0
      %345 = vmatpush1.bf16.msra.mxu0 0
      %346 = vmatprep.subr.bf16.mxu0 0
      %347 = vmatpush1.bf16.msra.mxu0 0
      %348 = vmatprep.subr.bf16.mxu0 0
      %349 = vmatpush1.bf16.msra.mxu0 0
      %350 = vmatprep.subr.bf16.mxu0 0
      %351 = vmatpush1.bf16.msra.mxu0 0
      %352 = vmatprep.subr.bf16.mxu0 0
      %353 = vmatpush1.bf16.msra.mxu0 0
      %354 = vmatprep.subr.bf16.mxu0 0
      %355 = vmatpush1.bf16.msra.mxu0 0
      %356 = vmatprep.mubr.bf16.mxu0 0
      %357 = vmatmul.mubr.bf16.gmra.mrb[0].mxu0 %v319
      %v358 = vpop.f32.mrb[0].mxu0
      %v359 = vadd.f32 %v312, %v358
      %v360 = vpop.f32.mrb[0].mxu0
      %v361 = vpop.f32.mrb[0].mxu0
      %v362 = vadd.f32 %v315, %v361
      %v363 = vpop.f32.mrb[0].mxu0
      %364 = vdwg.mxu0
      %vm365 = vcmask 1045504
      %v366 = vrot.slane %v262, 2
      %v367 = vrot.slane %v263, 2
      %v368 = vsel %vm365, %v366, %v367
      %v370 = vsel %vm251, %v368, 0
      %v373 = vsel %vm273, %v248, 0
      %375 = vmatprep.subr.bf16.mxu0 0
      %376 = vmatpush1.bf16.msra.mxu0 %v373
      %377 = vmatprep.subr.bf16.mxu0 0
      %378 = vmatpush1.bf16.msra.mxu0 0
      %379 = vmatprep.subr.bf16.mxu0 0
      %380 = vmatpush1.bf16.msra.mxu0 0
      %381 = vmatprep.subr.bf16.mxu0 0
      %382 = vmatpush1.bf16.msra.mxu0 0
      %383 = vmatprep.subr.bf16.mxu0 0
      %384 = vmatpush1.bf16.msra.mxu0 0
      %385 = vmatprep.subr.bf16.mxu0 0
      %386 = vmatpush1.bf16.msra.mxu0 0
      %387 = vmatprep.subr.bf16.mxu0 0
      %388 = vmatpush1.bf16.msra.mxu0 0
      %389 = vmatprep.subr.bf16.mxu0 0
      %390 = vmatpush1.bf16.msra.mxu0 0
      %391 = vmatprep.subr.bf16.mxu0 0
      %392 = vmatpush1.bf16.msra.mxu0 0
      %393 = vmatprep.subr.bf16.mxu0 0
      %394 = vmatpush1.bf16.msra.mxu0 0
      %395 = vmatprep.subr.bf16.mxu0 0
      %396 = vmatpush1.bf16.msra.mxu0 0
      %397 = vmatprep.subr.bf16.mxu0 0
      %398 = vmatpush1.bf16.msra.mxu0 0
      %399 = vmatprep.subr.bf16.mxu0 0
      %400 = vmatpush1.bf16.msra.mxu0 0
      %401 = vmatprep.subr.bf16.mxu0 0
      %402 = vmatpush1.bf16.msra.mxu0 0
      %403 = vmatprep.subr.bf16.mxu0 0
      %404 = vmatpush1.bf16.msra.mxu0 0
      %405 = vmatprep.subr.bf16.mxu0 0
      %406 = vmatpush1.bf16.msra.mxu0 0
      %407 = vmatprep.mubr.bf16.mxu0 0
      %408 = vmatmul.mubr.bf16.gmra.mrb[0].mxu0 %v370
      %v409 = vpop.f32.mrb[0].mxu0
      %v410 = vadd.f32 0.0, %v409
      %v411 = vpop.f32.mrb[0].mxu0
      %v412 = vpop.f32.mrb[0].mxu0
      %v413 = vadd.f32 0.0, %v412
      %v414 = vpop.f32.mrb[0].mxu0
      %415 = vdwg.mxu0
      %v416 = vadd.f32 %v359, %v410
      %v417 = vadd.f32 %v362, %v413
      %vm418 = vcmask 1044480
      %v419 = vrot.slane %v262, 3
      %v420 = vrot.slane %v263, 3
      %v421 = vsel %vm418, %v419, %v420
      %v423 = vsel %vm251, %v421, 0
      %v426 = vsel %vm273, %v249, 0
      %428 = vmatprep.subr.bf16.mxu0 0
      %429 = vmatpush1.bf16.msra.mxu0 %v426
      %430 = vmatprep.subr.bf16.mxu0 0
      %431 = vmatpush1.bf16.msra.mxu0 0
      %432 = vmatprep.subr.bf16.mxu0 0
      %433 = vmatpush1.bf16.msra.mxu0 0
      %434 = vmatprep.subr.bf16.mxu0 0
      %435 = vmatpush1.bf16.msra.mxu0 0
      %436 = vmatprep.subr.bf16.mxu0 0
      %437 = vmatpush1.bf16.msra.mxu0 0
      %438 = vmatprep.subr.bf16.mxu0 0
      %439 = vmatpush1.bf16.msra.mxu0 0
      %440 = vmatprep.subr.bf16.mxu0 0
      %441 = vmatpush1.bf16.msra.mxu0 0
      %442 = vmatprep.subr.bf16.mxu0 0
      %443 = vmatpush1.bf16.msra.mxu0 0
      %444 = vmatprep.subr.bf16.mxu0 0
      %445 = vmatpush1.bf16.msra.mxu0 0
      %446 = vmatprep.subr.bf16.mxu0 0
      %447 = vmatpush1.bf16.msra.mxu0 0
      %448 = vmatprep.subr.bf16.mxu0 0
      %449 = vmatpush1.bf16.msra.mxu0 0
      %450 = vmatprep.subr.bf16.mxu0 0
      %451 = vmatpush1.bf16.msra.mxu0 0
      %452 = vmatprep.subr.bf16.mxu0 0
      %453 = vmatpush1.bf16.msra.mxu0 0
      %454 = vmatprep.subr.bf16.mxu0 0
      %455 = vmatpush1.bf16.msra.mxu0 0
      %456 = vmatprep.subr.bf16.mxu0 0
      %457 = vmatpush1.bf16.msra.mxu0 0
      %458 = vmatprep.subr.bf16.mxu0 0
      %459 = vmatpush1.bf16.msra.mxu0 0
      %460 = vmatprep.mubr.bf16.mxu0 0
      %461 = vmatmul.mubr.bf16.gmra.mrb[0].mxu0 %v423
      %v462 = vpop.f32.mrb[0].mxu0
      %v463 = vadd.f32 0.0, %v462
      %v464 = vpop.f32.mrb[0].mxu0
      %v465 = vpop.f32.mrb[0].mxu0
      %v466 = vadd.f32 0.0, %v465
      %v467 = vpop.f32.mrb[0].mxu0
      %468 = vdwg.mxu0
      %v469 = vadd.f32 %v416, %v463
      %v470 = vadd.f32 %v417, %v466
      %v471 = vpack.c.bf16 %v261, %v260
      %v473 = vsel %vm251, %v471, 0
      %v476 = vsel %vm273, %v250, 0
      %478 = vmatprep.subr.bf16.mxu0 0
      %479 = vmatpush1.bf16.msra.mxu0 %v476
      %480 = vmatprep.subr.bf16.mxu0 0
      %481 = vmatpush1.bf16.msra.mxu0 0
      %482 = vmatprep.subr.bf16.mxu0 0
      %483 = vmatpush1.bf16.msra.mxu0 0
      %484 = vmatprep.subr.bf16.mxu0 0
      %485 = vmatpush1.bf16.msra.mxu0 0
      %486 = vmatprep.subr.bf16.mxu0 0
      %487 = vmatpush1.bf16.msra.mxu0 0
      %488 = vmatprep.subr.bf16.mxu0 0
      %489 = vmatpush1.bf16.msra.mxu0 0
      %490 = vmatprep.subr.bf16.mxu0 0
      %491 = vmatpush1.bf16.msra.mxu0 0
      %492 = vmatprep.subr.bf16.mxu0 0
      %493 = vmatpush1.bf16.msra.mxu0 0
      %494 = vmatprep.subr.bf16.mxu0 0
      %495 = vmatpush1.bf16.msra.mxu0 0
      %496 = vmatprep.subr.bf16.mxu0 0
      %497 = vmatpush1.bf16.msra.mxu0 0
      %498 = vmatprep.subr.bf16.mxu0 0
      %499 = vmatpush1.bf16.msra.mxu0 0
      %500 = vmatprep.subr.bf16.mxu0 0
      %501 = vmatpush1.bf16.msra.mxu0 0
      %502 = vmatprep.subr.bf16.mxu0 0
      %503 = vmatpush1.bf16.msra.mxu0 0
      %504 = vmatprep.subr.bf16.mxu0 0
      %505 = vmatpush1.bf16.msra.mxu0 0
      %506 = vmatprep.subr.bf16.mxu0 0
      %507 = vmatpush1.bf16.msra.mxu0 0
      %508 = vmatprep.subr.bf16.mxu0 0
      %509 = vmatpush1.bf16.msra.mxu0 0
      %510 = vmatprep.mubr.bf16.mxu0 0
      %511 = vmatmul.mubr.bf16.gmra.mrb[0].mxu0 %v473
      %v512 = vpop.f32.mrb[0].mxu0
      %v513 = vadd.f32 0.0, %v512
      %v514 = vpop.f32.mrb[0].mxu0
      %v515 = vpop.f32.mrb[0].mxu0
      %v516 = vadd.f32 0.0, %v515
      %v517 = vpop.f32.mrb[0].mxu0
      %518 = vdwg.mxu0
      %v519 = vadd.f32 %v469, %v513
      %v520 = vadd.f32 %v470, %v516
      %v521 = vld [vmem:[%s2] sm:$0x1]
      %v523 = vlaneseq
      %v524 = vshrl.u32 %v523, 7
      %v525 = vsub.s32 0, %v524
      %v526 = vrot.slane %v521, %v525
      %v528 = vmul.f32 %v519, %v526
      %v529 = vmul.f32 %v520, %v526
      %v530 = vld [vmem:[%s3] sm:$0x1]
      %v532 = vlaneseq
      %v533 = vshrl.u32 %v532, 7
      %v534 = vsub.s32 0, %v533
      %v535 = vrot.slane %v530, %v534
      %v537 = vadd.f32 %v528, %v535
      %v538 = vadd.f32 %v529, %v535
      %v539 = vmax.f32 %v537, 0.0
      %v540 = vmax.f32 %v538, 0.0
      %v541 = vld [vmem:[%s239] sm:$0xff]
      %v542 = vld [vmem:[%s239 + $0x8] sm:$0xff]
      %v543 = vadd.f32 %v539, %v541
      %v544 = vadd.f32 %v540, %v542
      %v545 = vmax.f32 %v543, 0.0
      %v546 = vmax.f32 %v544, 0.0
      %547 = vst.msk [vmem:[%s244] sm:$0xff] %vm251, %v545
      %548 = vst.msk [vmem:[%s244 + $0x8] sm:$0xff] %vm251, %v546
      %p549 = scmp.lt.s32.totalorder %s16, 1
      %s550 = scalar_select %p549, %s16, 1
      %s551 = smul.addr %s550, 2
      %s552 = smul.addr %s551, 8
      %s553 = scalar_lea.vmem %s5, %s552
      // Predicated region
      $region41: #{_lambda_.5} parent=39 // pred_check
        %p554 = pneg %p149
      $region42: #{_lambda_.5} parent=39 // pred_check_branch
        %556 = sbr.rel (%p554) target = $region44
      $region43: #{_lambda_.5} parent=39 // pred_region
        _
      $region44: #{_lambda_.5} parent=39 // pred_fallthru
        _
    $region40: #{_lambda_.5} parent=5 // pred_fallthru
      _
    %p557 = scmp.le.s32.totalorder 2, %s11
    // Predicated region
    $region45: #{_lambda_.5} parent=5 // pred_check
      %p558 = pneg %p557
    $region46: #{_lambda_.5} parent=5 // pred_check_branch
      %560 = sbr.rel (%p558) target = $region48
    $region47: #{_lambda_.5} parent=5 // pred_region
      %s561 = ssub.s32 %s11, 2
      // Predicated region
      $region49: #{_lambda_.5} parent=47 // pred_check
        %p562 = pneg %p155
      $region50: #{_lambda_.5} parent=47 // pred_check_branch
        %564 = sbr.rel (%p562) target = $region52
      $region51: #{_lambda_.5} parent=47 // pred_region
        %p565 = scmp.lt.s32.totalorder %s17, 1
        %s566 = scalar_select %p565, %s17, 1
        %s567 = smul.addr %s566, 2
        %s568 = smul.addr %s567, 8
        %s569 = scalar_lea.vmem %s5, %s568
      $region52: #{_lambda_.5} parent=47 // pred_fallthru
        _
    $region48: #{_lambda_.5} parent=5 // pred_fallthru
      _
  $region6: #{_lambda_.5} parent=0 // loop_footer
    %s15 = sadd.s32 1, %s11
  $region7: #{_lambda_.5} parent=0 // loop_footer_branch
    %10 = sbr.rel target = $region3
  $region8: #{_lambda_.5} parent=0 // loop_exit
    _

// kernel: _lambda_.3
$region0: #{_lambda_.3}
  #allocation0 [shape = 'u32[]', space=smem, size = 0x4, offset = 0x4, fixed_abs, tag = 'smem constant byte address 0x4 - core index']
  #allocation1 [shape = 'u32[144,128]{1,0:T(1,128)}', space=vmem, size = 0x12000, scoped, tag = 'internal scratch']
  %s0 = inlined_call_operand.vmem [shape: f32[2,16,4], index: 0, kind: input, shape index: {}]
  %s1 = inlined_call_operand.vmem [shape: bf16[1,4,8], index: 1, kind: input, shape index: {}]
  %s2 = inlined_call_operand.vmem [shape: f32[1,8], index: 2, kind: input, shape index: {}]
  %s3 = inlined_call_operand.vmem [shape: f32[1,8], index: 3, kind: input, shape index: {}]
  %s4 = inlined_call_operand.vmem [shape: f32[2,16,8], index: 4, kind: output, shape index: {}]
  %s5 = sld [smem:[#allocation0]]
  $region49: #{_lambda_.3} parent=0
    _
  %s7 = ssub.s32 1, %s5
  %s8 = scalar_select 0, %s7, %s5
  loop: start=0, step=1, limit=4
  $region2: #{_lambda_.3} parent=0 // loop_pre_header
    _
  $region3: #{_lambda_.3} parent=0 // loop_header
    %s10 = sphi 0, %s14
    %p11 = scmp.ge.s32.totalorder %s10, 4
    %s20 = sphi 0, %s22
    %s23 = sphi 0, %s20
    %s24 = sphi 0, %s23
    %s40 = sphi 0, %s24
    %s44 = sphi 0, %s44
    %s46 = sphi 0, %s44
    %s47 = sphi 0, %s46
    %s61 = sphi 0, %s47
    %s65 = sphi 0, %s65
    %s67 = sphi 0, %s65
    %s68 = sphi 0, %s67
    %s82 = sphi 0, %s68
    %s86 = sphi 0, %s86
    %s88 = sphi 0, %s86
    %s89 = sphi 0, %s88
    %s103 = sphi 0, %s89
    %s109 = sphi 0, %s111
    %s112 = sphi 0, %s109
    %s113 = sphi 0, %s112
    %s129 = sphi 0, %s113
  $region4: #{_lambda_.3} parent=0 // loop_header_branch
    %13 = sbr.rel (%p11) target = $region8
  $region5: #{_lambda_.3} parent=0 // loop_body
    %s15 = ssub.s32 %s10, 1
    %s16 = ssub.s32 %s10, 2
    %s17 = sadd.s32 %s10, 1
    %s18 = ssub.s32 %s10, %s17
    %p19 = scmp.eq.s32.totalorder %s18, 0
    %s21 = sadd.s32 %s20, 1
    %s22 = scalar_select %p19, %s20, %s21
    %p25 = pneg %p19
    %p26 = scmp.eq.s32.totalorder %s10, 1
    %p27 = por %p25, %p26
    %p28 = scmp.ne.s32.totalorder %s20, %s23
    %p29 = scmp.eq.s32.totalorder %s10, 0
    %p30 = por %p28, %p29
    %p31 = scmp.ne.s32.totalorder %s20, %s23
    %p32 = scmp.eq.s32.totalorder %s15, 1
    %p33 = por %p31, %p32
    %p34 = scmp.ne.s32.totalorder %s23, %s24
    %p35 = scmp.eq.s32.totalorder %s15, 0
    %p36 = por %p34, %p35
    %p37 = scmp.ne.s32.totalorder %s23, %s24
    %p38 = scmp.eq.s32.totalorder %s16, 1
    %p39 = por %p37, %p38
    %p41 = scmp.ne.s32.totalorder %s24, %s40
    %p42 = scmp.eq.s32.totalorder %s16, 0
    %p43 = por %p41, %p42
    %s45 = sadd.s32 %s44, 1
    %p48 = scmp.eq.s32.totalorder %s10, 1
    %p49 = scmp.ne.s32.totalorder %s44, %s46
    %p50 = scmp.eq.s32.totalorder %s10, 0
    %p51 = por %p49, %p50
    %p52 = scmp.ne.s32.totalorder %s44, %s46
    %p53 = scmp.eq.s32.totalorder %s15, 1
    %p54 = por %p52, %p53
    %p55 = scmp.ne.s32.totalorder %s46, %s47
    %p56 = scmp.eq.s32.totalorder %s15, 0
    %p57 = por %p55, %p56
    %p58 = scmp.ne.s32.totalorder %s46, %s47
    %p59 = scmp.eq.s32.totalorder %s16, 1
    %p60 = por %p58, %p59
    %p62 = scmp.ne.s32.totalorder %s47, %s61
    %p63 = scmp.eq.s32.totalorder %s16, 0
    %p64 = por %p62, %p63
    %s66 = sadd.s32 %s65, 1
    %p69 = scmp.eq.s32.totalorder %s10, 1
    %p70 = scmp.ne.s32.totalorder %s65, %s67
    %p71 = scmp.eq.s32.totalorder %s10, 0
    %p72 = por %p70, %p71
    %p73 = scmp.ne.s32.totalorder %s65, %s67
    %p74 = scmp.eq.s32.totalorder %s15, 1
    %p75 = por %p73, %p74
    %p76 = scmp.ne.s32.totalorder %s67, %s68
    %p77 = scmp.eq.s32.totalorder %s15, 0
    %p78 = por %p76, %p77
    %p79 = scmp.ne.s32.totalorder %s67, %s68
    %p80 = scmp.eq.s32.totalorder %s16, 1
    %p81 = por %p79, %p80
    %p83 = scmp.ne.s32.totalorder %s68, %s82
    %p84 = scmp.eq.s32.totalorder %s16, 0
    %p85 = por %p83, %p84
    %s87 = sadd.s32 %s86, 1
    %p90 = scmp.eq.s32.totalorder %s10, 1
    %p91 = scmp.ne.s32.totalorder %s86, %s88
    %p92 = scmp.eq.s32.totalorder %s10, 0
    %p93 = por %p91, %p92
    %p94 = scmp.ne.s32.totalorder %s86, %s88
    %p95 = scmp.eq.s32.totalorder %s15, 1
    %p96 = por %p94, %p95
    %p97 = scmp.ne.s32.totalorder %s88, %s89
    %p98 = scmp.eq.s32.totalorder %s15, 0
    %p99 = por %p97, %p98
    %p100 = scmp.ne.s32.totalorder %s88, %s89
    %p101 = scmp.eq.s32.totalorder %s16, 1
    %p102 = por %p100, %p101
    %p104 = scmp.ne.s32.totalorder %s89, %s103
    %p105 = scmp.eq.s32.totalorder %s16, 0
    %p106 = por %p104, %p105
    %s107 = ssub.s32 %s10, %s17
    %p108 = scmp.eq.s32.totalorder %s107, 0
    %s110 = sadd.s32 %s109, 1
    %s111 = scalar_select %p108, %s109, %s110
    %p114 = pneg %p108
    %p115 = scmp.eq.s32.totalorder %s10, 1
    %p116 = por %p114, %p115
    %p117 = scmp.ne.s32.totalorder %s109, %s112
    %p118 = scmp.eq.s32.totalorder %s10, 0
    %p119 = por %p117, %p118
    %p120 = scmp.ne.s32.totalorder %s109, %s112
    %p121 = scmp.eq.s32.totalorder %s15, 1
    %p122 = por %p120, %p121
    %p123 = scmp.ne.s32.totalorder %s112, %s113
    %p124 = scmp.eq.s32.totalorder %s15, 0
    %p125 = por %p123, %p124
    %p126 = scmp.ne.s32.totalorder %s112, %s113
    %p127 = scmp.eq.s32.totalorder %s16, 1
    %p128 = por %p126, %p127
    %p130 = scmp.ne.s32.totalorder %s113, %s129
    %p131 = scmp.eq.s32.totalorder %s16, 0
    %p132 = por %p130, %p131
    %p133 = scmp.le.s32.totalorder 1, %s10
    %p134 = scmp.lt.s32.totalorder %s10, 3
    %p135 = pnand %p133, %p134
    %p136 = pneg %p135
    // Predicated region
    $region9: #{_lambda_.3} parent=5 // pred_check
      _
    $region10: #{_lambda_.3} parent=5 // pred_check_branch
      %138 = sbr.rel (%p135) target = $region12
    $region11: #{_lambda_.3} parent=5 // pred_region
      %s139 = ssub.s32 %s10, 1
      // Predicated region
      $region13: #{_lambda_.3} parent=11 // pred_check
        %p140 = pneg %p57
      $region14: #{_lambda_.3} parent=11 // pred_check_branch
        %142 = sbr.rel (%p140) target = $region16
      $region15: #{_lambda_.3} parent=11 // pred_region
        _
      $region16: #{_lambda_.3} parent=11 // pred_fallthru
        _
      // Predicated region
      $region17: #{_lambda_.3} parent=11 // pred_check
        %p143 = pneg %p78
      $region18: #{_lambda_.3} parent=11 // pred_check_branch
        %145 = sbr.rel (%p143) target = $region20
      $region19: #{_lambda_.3} parent=11 // pred_region
        _
      $region20: #{_lambda_.3} parent=11 // pred_fallthru
        _
      // Predicated region
      $region21: #{_lambda_.3} parent=11 // pred_check
        %p146 = pneg %p99
      $region22: #{_lambda_.3} parent=11 // pred_check_branch
        %148 = sbr.rel (%p146) target = $region24
      $region23: #{_lambda_.3} parent=11 // pred_region
        _
      $region24: #{_lambda_.3} parent=11 // pred_fallthru
        _
    $region12: #{_lambda_.3} parent=5 // pred_fallthru
      _
    %p149 = scmp.lt.s32.totalorder %s10, 2
    // Predicated region
    $region25: #{_lambda_.3} parent=5 // pred_check
      %p150 = pneg %p149
    $region26: #{_lambda_.3} parent=5 // pred_check_branch
      %152 = sbr.rel (%p150) target = $region28
    $region27: #{_lambda_.3} parent=5 // pred_region
      // Predicated region
      $region29: #{_lambda_.3} parent=27 // pred_check
        %p153 = pneg %p30
      $region30: #{_lambda_.3} parent=27 // pred_check_branch
        %155 = sbr.rel (%p153) target = $region32
      $region31: #{_lambda_.3} parent=27 // pred_region
        %p156 = scmp.lt.s32.totalorder %s10, 1
        %s157 = scalar_select %p156, %s10, 1
        %s158 = smul.addr %s157, 2
        %s159 = smul.addr %s158, 8
        %s160 = scalar_lea.vmem %s0, %s159
      $region32: #{_lambda_.3} parent=27 // pred_fallthru
        _
    $region28: #{_lambda_.3} parent=5 // pred_fallthru
      _
    %p161 = scmp.le.s32.totalorder 1, %s10
    %p162 = scmp.lt.s32.totalorder %s10, 3
    %p163 = pnand %p161, %p162
    %p164 = pneg %p163
    // Predicated region
    $region33: #{_lambda_.3} parent=5 // pred_check
      _
    $region34: #{_lambda_.3} parent=5 // pred_check_branch
      %166 = sbr.rel (%p163) target = $region36
    $region35: #{_lambda_.3} parent=5 // pred_region
      %s167 = ssub.s32 %s10, 1
      %p168 = scmp.lt.s32.totalorder %s15, 1
      %s169 = scalar_select %p168, %s15, 1
      %s170 = smul.addr %s169, 2
      %s171 = smul.addr %s170, 8
      %s172 = scalar_lea.vmem %s0, %s171
      %p173 = pneg %p36
      %p174 = pneg %p33
      %p175 = pneg %p57
      %p176 = pneg %p54
      %p177 = pneg %p78
      %p178 = pneg %p75
      %p179 = pneg %p99
      %p180 = pneg %p96
      %p181 = pneg %p125
      %p182 = pneg %p122
      %p183 = scmp.lt.s32.totalorder %s15, 1
      %s184 = scalar_select %p183, %s15, 1
      %s185 = smul.addr %s184, 2
      %s186 = smul.addr %s185, 8
      %s187 = scalar_lea.vmem %s4, %s186
      %p188 = scmp.lt.s32.totalorder %s15, 1
      %s189 = scalar_select %p188, %s15, 1
      %s190 = smul.addr %s189, 2
      %s191 = smul.addr %s190, 8
      %s192 = scalar_lea.vmem %s0, %s191
      %p193 = scmp.lt.s32.totalorder %s15, 1
      %s194 = scalar_select %p193, %s15, 1
      %s195 = smul.addr %s194, 2
      %s196 = smul.addr %s195, 8
      %s197 = scalar_lea.vmem %s4, %s196
      %v199 = vld [vmem:[%s1] sm:$0x3]
      %v200 = vld [vmem:[%s192] sm:$0xff]
      %v201 = vld [vmem:[%s192 + $0x8] sm:$0xff]
      %v202 = vpack.c.bf16 %v201, %v200
      %vm203 = vcmask 31744
      %v205 = vsel %vm203, %v202, 0
      %vm207 = vcmask 1041408
      %v209 = vsel %vm207, %v199, 0
      %211 = vmatprep.subr.bf16.mxu0 0
      %212 = vmatpush1.bf16.msra.mxu0 %v209
      %213 = vmatprep.subr.bf16.mxu0 0
      %214 = vmatpush1.bf16.msra.mxu0 0
      %215 = vmatprep.subr.bf16.mxu0 0
      %216 = vmatpush1.bf16.msra.mxu0 0
      %217 = vmatprep.subr.bf16.mxu0 0
      %218 = vmatpush1.bf16.msra.mxu0 0
      %219 = vmatprep.subr.bf16.mxu0 0
      %220 = vmatpush1.bf16.msra.mxu0 0
      %221 = vmatprep.subr.bf16.mxu0 0
      %222 = vmatpush1.bf16.msra.mxu0 0
      %223 = vmatprep.subr.bf16.mxu0 0
      %224 = vmatpush1.bf16.msra.mxu0 0
      %225 = vmatprep.subr.bf16.mxu0 0
      %226 = vmatpush1.bf16.msra.mxu0 0
      %227 = vmatprep.subr.bf16.mxu0 0
      %228 = vmatpush1.bf16.msra.mxu0 0
      %229 = vmatprep.subr.bf16.mxu0 0
      %230 = vmatpush1.bf16.msra.mxu0 0
      %231 = vmatprep.subr.bf16.mxu0 0
      %232 = vmatpush1.bf16.msra.mxu0 0
      %233 = vmatprep.subr.bf16.mxu0 0
      %234 = vmatpush1.bf16.msra.mxu0 0
      %235 = vmatprep.subr.bf16.mxu0 0
      %236 = vmatpush1.bf16.msra.mxu0 0
      %237 = vmatprep.subr.bf16.mxu0 0
      %238 = vmatpush1.bf16.msra.mxu0 0
      %239 = vmatprep.subr.bf16.mxu0 0
      %240 = vmatpush1.bf16.msra.mxu0 0
      %241 = vmatprep.subr.bf16.mxu0 0
      %242 = vmatpush1.bf16.msra.mxu0 0
      %243 = vmatprep.mubr.bf16.mxu0 0
      %244 = vmatmul.mubr.bf16.gmra.mrb[0].mxu0 %v205
      %v245 = vpop.f32.mrb[0].mxu0
      %v246 = vadd.f32 0.0, %v245
      %v247 = vpop.f32.mrb[0].mxu0
      %v248 = vpop.f32.mrb[0].mxu0
      %v249 = vadd.f32 0.0, %v248
      %v250 = vpop.f32.mrb[0].mxu0
      %251 = vdwg.mxu0
      %v252 = vld [vmem:[%s2] sm:$0x1]
      %v254 = vlaneseq
      %v255 = vshrl.u32 %v254, 7
      %v256 = vsub.s32 0, %v255
      %v257 = vrot.slane %v252, %v256
      %v259 = vmul.f32 %v246, %v257
      %v260 = vmul.f32 %v249, %v257
      %v261 = vld [vmem:[%s3] sm:$0x1]
      %v263 = vlaneseq
      %v264 = vshrl.u32 %v263, 7
      %v265 = vsub.s32 0, %v264
      %v266 = vrot.slane %v261, %v265
      %v268 = vadd.f32 %v259, %v266
      %v269 = vadd.f32 %v260, %v266
      %vm270 = vcmask 64512
      %271 = vst.msk [vmem:[%s197] sm:$0xff] %vm270, %v268
      %272 = vst.msk [vmem:[%s197 + $0x8] sm:$0xff] %vm270, %v269
      %p273 = scmp.lt.s32.totalorder %s15, 1
      %s274 = scalar_select %p273, %s15, 1
      %s275 = smul.addr %s274, 2
      %s276 = smul.addr %s275, 8
      %s277 = scalar_lea.vmem %s4, %s276
      // Predicated region
      $region37: #{_lambda_.3} parent=35 // pred_check
        %p278 = pneg %p122
      $region38: #{_lambda_.3} parent=35 // pred_check_branch
        %280 = sbr.rel (%p278) target = $region40
      $region39: #{_lambda_.3} parent=35 // pred_region
        _
      $region40: #{_lambda_.3} parent=35 // pred_fallthru
        _
    $region36: #{_lambda_.3} parent=5 // pred_fallthru
      _
    %p281 = scmp.le.s32.totalorder 2, %s10
    // Predicated region
    $region41: #{_lambda_.3} parent=5 // pred_check
      %p282 = pneg %p281
    $region42: #{_lambda_.3} parent=5 // pred_check_branch
      %284 = sbr.rel (%p282) target = $region44
    $region43: #{_lambda_.3} parent=5 // pred_region
      %s285 = ssub.s32 %s10, 2
      // Predicated region
      $region45: #{_lambda_.3} parent=43 // pred_check
        %p286 = pneg %p128
      $region46: #{_lambda_.3} parent=43 // pred_check_branch
        %288 = sbr.rel (%p286) target = $region48
      $region47: #{_lambda_.3} parent=43 // pred_region
        %p289 = scmp.lt.s32.totalorder %s16, 1
        %s290 = scalar_select %p289, %s16, 1
        %s291 = smul.addr %s290, 2
        %s292 = smul.addr %s291, 8
        %s293 = scalar_lea.vmem %s4, %s292
      $region48: #{_lambda_.3} parent=43 // pred_fallthru
        _
    $region44: #{_lambda_.3} parent=5 // pred_fallthru
      _
  $region6: #{_lambda_.3} parent=0 // loop_footer
    %s14 = sadd.s32 1, %s10
  $region7: #{_lambda_.3} parent=0 // loop_footer_branch
    %9 = sbr.rel target = $region3
  $region8: #{_lambda_.3} parent=0 // loop_exit
    _

// kernel: _lambda_.4
$region0: #{_lambda_.4}
  #allocation0 [shape = 'u32[]', space=smem, size = 0x4, offset = 0x4, fixed_abs, tag = 'smem constant byte address 0x4 - core index']
  #allocation1 [shape = 'u32[144,128]{1,0:T(1,128)}', space=vmem, size = 0x12000, scoped, tag = 'internal scratch']
  #allocation2 [shape = 'f32[24,4]{1,0:T(8,128)}', space=vmem, size = 0x3000, scoped, tag = 'scratch operand']
  %s0 = inlined_call_operand.vmem [shape: f32[2,16,4], index: 0, kind: input, shape index: {}]
  %s1 = inlined_call_operand.vmem [shape: bf16[5,4,8], index: 1, kind: input, shape index: {}]
  %s2 = inlined_call_operand.vmem [shape: f32[1,8], index: 2, kind: input, shape index: {}]
  %s3 = inlined_call_operand.vmem [shape: f32[1,8], index: 3, kind: input, shape index: {}]
  %s4 = inlined_call_operand.vmem [shape: f32[2,16,8], index: 4, kind: output, shape index: {}]
  %s5 = sld [smem:[#allocation0]]
  $region49: #{_lambda_.4} parent=0
    _
  %s7 = ssub.s32 1, %s5
  %s8 = scalar_select 0, %s7, %s5
  loop: start=0, step=1, limit=4
  $region2: #{_lambda_.4} parent=0 // loop_pre_header
    _
  $region3: #{_lambda_.4} parent=0 // loop_header
    %s10 = sphi 0, %s14
    %p11 = scmp.ge.s32.totalorder %s10, 4
    %s20 = sphi 0, %s22
    %s23 = sphi 0, %s20
    %s24 = sphi 0, %s23
    %s40 = sphi 0, %s24
    %s44 = sphi 0, %s44
    %s46 = sphi 0, %s44
    %s47 = sphi 0, %s46
    %s61 = sphi 0, %s47
    %s65 = sphi 0, %s65
    %s67 = sphi 0, %s65
    %s68 = sphi 0, %s67
    %s82 = sphi 0, %s68
    %s86 = sphi 0, %s86
    %s88 = sphi 0, %s86
    %s89 = sphi 0, %s88
    %s103 = sphi 0, %s89
    %s109 = sphi 0, %s111
    %s112 = sphi 0, %s109
    %s113 = sphi 0, %s112
    %s129 = sphi 0, %s113
  $region4: #{_lambda_.4} parent=0 // loop_header_branch
    %13 = sbr.rel (%p11) target = $region8
  $region5: #{_lambda_.4} parent=0 // loop_body
    %s15 = ssub.s32 %s10, 1
    %s16 = ssub.s32 %s10, 2
    %s17 = sadd.s32 %s10, 1
    %s18 = ssub.s32 %s10, %s17
    %p19 = scmp.eq.s32.totalorder %s18, 0
    %s21 = sadd.s32 %s20, 1
    %s22 = scalar_select %p19, %s20, %s21
    %p25 = pneg %p19
    %p26 = scmp.eq.s32.totalorder %s10, 1
    %p27 = por %p25, %p26
    %p28 = scmp.ne.s32.totalorder %s20, %s23
    %p29 = scmp.eq.s32.totalorder %s10, 0
    %p30 = por %p28, %p29
    %p31 = scmp.ne.s32.totalorder %s20, %s23
    %p32 = scmp.eq.s32.totalorder %s15, 1
    %p33 = por %p31, %p32
    %p34 = scmp.ne.s32.totalorder %s23, %s24
    %p35 = scmp.eq.s32.totalorder %s15, 0
    %p36 = por %p34, %p35
    %p37 = scmp.ne.s32.totalorder %s23, %s24
    %p38 = scmp.eq.s32.totalorder %s16, 1
    %p39 = por %p37, %p38
    %p41 = scmp.ne.s32.totalorder %s24, %s40
    %p42 = scmp.eq.s32.totalorder %s16, 0
    %p43 = por %p41, %p42
    %s45 = sadd.s32 %s44, 1
    %p48 = scmp.eq.s32.totalorder %s10, 1
    %p49 = scmp.ne.s32.totalorder %s44, %s46
    %p50 = scmp.eq.s32.totalorder %s10, 0
    %p51 = por %p49, %p50
    %p52 = scmp.ne.s32.totalorder %s44, %s46
    %p53 = scmp.eq.s32.totalorder %s15, 1
    %p54 = por %p52, %p53
    %p55 = scmp.ne.s32.totalorder %s46, %s47
    %p56 = scmp.eq.s32.totalorder %s15, 0
    %p57 = por %p55, %p56
    %p58 = scmp.ne.s32.totalorder %s46, %s47
    %p59 = scmp.eq.s32.totalorder %s16, 1
    %p60 = por %p58, %p59
    %p62 = scmp.ne.s32.totalorder %s47, %s61
    %p63 = scmp.eq.s32.totalorder %s16, 0
    %p64 = por %p62, %p63
    %s66 = sadd.s32 %s65, 1
    %p69 = scmp.eq.s32.totalorder %s10, 1
    %p70 = scmp.ne.s32.totalorder %s65, %s67
    %p71 = scmp.eq.s32.totalorder %s10, 0
    %p72 = por %p70, %p71
    %p73 = scmp.ne.s32.totalorder %s65, %s67
    %p74 = scmp.eq.s32.totalorder %s15, 1
    %p75 = por %p73, %p74
    %p76 = scmp.ne.s32.totalorder %s67, %s68
    %p77 = scmp.eq.s32.totalorder %s15, 0
    %p78 = por %p76, %p77
    %p79 = scmp.ne.s32.totalorder %s67, %s68
    %p80 = scmp.eq.s32.totalorder %s16, 1
    %p81 = por %p79, %p80
    %p83 = scmp.ne.s32.totalorder %s68, %s82
    %p84 = scmp.eq.s32.totalorder %s16, 0
    %p85 = por %p83, %p84
    %s87 = sadd.s32 %s86, 1
    %p90 = scmp.eq.s32.totalorder %s10, 1
    %p91 = scmp.ne.s32.totalorder %s86, %s88
    %p92 = scmp.eq.s32.totalorder %s10, 0
    %p93 = por %p91, %p92
    %p94 = scmp.ne.s32.totalorder %s86, %s88
    %p95 = scmp.eq.s32.totalorder %s15, 1
    %p96 = por %p94, %p95
    %p97 = scmp.ne.s32.totalorder %s88, %s89
    %p98 = scmp.eq.s32.totalorder %s15, 0
    %p99 = por %p97, %p98
    %p100 = scmp.ne.s32.totalorder %s88, %s89
    %p101 = scmp.eq.s32.totalorder %s16, 1
    %p102 = por %p100, %p101
    %p104 = scmp.ne.s32.totalorder %s89, %s103
    %p105 = scmp.eq.s32.totalorder %s16, 0
    %p106 = por %p104, %p105
    %s107 = ssub.s32 %s10, %s17
    %p108 = scmp.eq.s32.totalorder %s107, 0
    %s110 = sadd.s32 %s109, 1
    %s111 = scalar_select %p108, %s109, %s110
    %p114 = pneg %p108
    %p115 = scmp.eq.s32.totalorder %s10, 1
    %p116 = por %p114, %p115
    %p117 = scmp.ne.s32.totalorder %s109, %s112
    %p118 = scmp.eq.s32.totalorder %s10, 0
    %p119 = por %p117, %p118
    %p120 = scmp.ne.s32.totalorder %s109, %s112
    %p121 = scmp.eq.s32.totalorder %s15, 1
    %p122 = por %p120, %p121
    %p123 = scmp.ne.s32.totalorder %s112, %s113
    %p124 = scmp.eq.s32.totalorder %s15, 0
    %p125 = por %p123, %p124
    %p126 = scmp.ne.s32.totalorder %s112, %s113
    %p127 = scmp.eq.s32.totalorder %s16, 1
    %p128 = por %p126, %p127
    %p130 = scmp.ne.s32.totalorder %s113, %s129
    %p131 = scmp.eq.s32.totalorder %s16, 0
    %p132 = por %p130, %p131
    %p133 = scmp.le.s32.totalorder 1, %s10
    %p134 = scmp.lt.s32.totalorder %s10, 3
    %p135 = pnand %p133, %p134
    %p136 = pneg %p135
    // Predicated region
    $region9: #{_lambda_.4} parent=5 // pred_check
      _
    $region10: #{_lambda_.4} parent=5 // pred_check_branch
      %138 = sbr.rel (%p135) target = $region12
    $region11: #{_lambda_.4} parent=5 // pred_region
      %s139 = ssub.s32 %s10, 1
      // Predicated region
      $region13: #{_lambda_.4} parent=11 // pred_check
        %p140 = pneg %p57
      $region14: #{_lambda_.4} parent=11 // pred_check_branch
        %142 = sbr.rel (%p140) target = $region16
      $region15: #{_lambda_.4} parent=11 // pred_region
        _
      $region16: #{_lambda_.4} parent=11 // pred_fallthru
        _
      // Predicated region
      $region17: #{_lambda_.4} parent=11 // pred_check
        %p143 = pneg %p78
      $region18: #{_lambda_.4} parent=11 // pred_check_branch
        %145 = sbr.rel (%p143) target = $region20
      $region19: #{_lambda_.4} parent=11 // pred_region
        _
      $region20: #{_lambda_.4} parent=11 // pred_fallthru
        _
      // Predicated region
      $region21: #{_lambda_.4} parent=11 // pred_check
        %p146 = pneg %p99
      $region22: #{_lambda_.4} parent=11 // pred_check_branch
        %148 = sbr.rel (%p146) target = $region24
      $region23: #{_lambda_.4} parent=11 // pred_region
        _
      $region24: #{_lambda_.4} parent=11 // pred_fallthru
        _
    $region12: #{_lambda_.4} parent=5 // pred_fallthru
      _
    %p149 = scmp.lt.s32.totalorder %s10, 2
    // Predicated region
    $region25: #{_lambda_.4} parent=5 // pred_check
      %p150 = pneg %p149
    $region26: #{_lambda_.4} parent=5 // pred_check_branch
      %152 = sbr.rel (%p150) target = $region28
    $region27: #{_lambda_.4} parent=5 // pred_region
      // Predicated region
      $region29: #{_lambda_.4} parent=27 // pred_check
        %p153 = pneg %p30
      $region30: #{_lambda_.4} parent=27 // pred_check_branch
        %155 = sbr.rel (%p153) target = $region32
      $region31: #{_lambda_.4} parent=27 // pred_region
        %p156 = scmp.lt.s32.totalorder %s10, 1
        %s157 = scalar_select %p156, %s10, 1
        %s158 = smul.addr %s157, 2
        %s159 = smul.addr %s158, 8
        %s160 = scalar_lea.vmem %s0, %s159
      $region32: #{_lambda_.4} parent=27 // pred_fallthru
        _
    $region28: #{_lambda_.4} parent=5 // pred_fallthru
      _
    %p161 = scmp.le.s32.totalorder 1, %s10
    %p162 = scmp.lt.s32.totalorder %s10, 3
    %p163 = pnand %p161, %p162
    %p164 = pneg %p163
    // Predicated region
    $region33: #{_lambda_.4} parent=5 // pred_check
      _
    $region34: #{_lambda_.4} parent=5 // pred_check_branch
      %166 = sbr.rel (%p163) target = $region36
    $region35: #{_lambda_.4} parent=5 // pred_region
      %s167 = ssub.s32 %s10, 1
      %p168 = scmp.lt.s32.totalorder %s15, 1
      %s169 = scalar_select %p168, %s15, 1
      %s170 = smul.addr %s169, 2
      %s171 = smul.addr %s170, 8
      %s172 = scalar_lea.vmem %s0, %s171
      %p173 = pneg %p36
      %p174 = pneg %p33
      %p175 = pneg %p57
      %p176 = pneg %p54
      %p177 = pneg %p78
      %p178 = pneg %p75
      %p179 = pneg %p99
      %p180 = pneg %p96
      %p181 = pneg %p125
      %p182 = pneg %p122
      %p183 = scmp.lt.s32.totalorder %s15, 1
      %s184 = scalar_select %p183, %s15, 1
      %s185 = smul.addr %s184, 2
      %s186 = smul.addr %s185, 8
      %s187 = scalar_lea.vmem %s4, %s186
      %p188 = scmp.lt.s32.totalorder %s15, 1
      %s189 = scalar_select %p188, %s15, 1
      %s190 = smul.addr %s189, 2
      %s191 = smul.addr %s190, 8
      %s192 = scalar_lea.vmem %s0, %s191
      %p193 = scmp.lt.s32.totalorder %s15, 1
      %s194 = scalar_select %p193, %s15, 1
      %s195 = smul.addr %s194, 2
      %s196 = smul.addr %s195, 8
      %s197 = scalar_lea.vmem %s4, %s196
      %v199 = vld [vmem:[%s1] sm:$0x3]
      %v200 = vld [vmem:[%s1 + $0x2] sm:$0x3]
      %v201 = vld [vmem:[%s1 + $0x4] sm:$0x3]
      %v202 = vld [vmem:[%s1 + $0x6] sm:$0x3]
      %v203 = vld [vmem:[%s1 + $0x8] sm:$0x3]
      %vm204 = vcmask 31744
      %205 = vst.msk [vmem:[#allocation2] sm:$0xff] %vm204, 0.0
      %206 = vst.msk [vmem:[#allocation2 + $0x8] sm:$0xff] %vm204, 0.0
      %207 = vst.msk [vmem:[#allocation2 + $0x10] sm:$0xff] %vm204, 0.0
      %v208 = vld [vmem:[%s192] sm:$0xff]
      %v209 = vld [vmem:[%s192 + $0x8] sm:$0xff]
      %210 = vst.msk [vmem:[#allocation2 + $0x4] sm:$0xff] %vm204, %v208
      %211 = vst.msk [vmem:[#allocation2 + $0xc] sm:$0xff] %vm204, %v209
      %v212 = vld [vmem:[#allocation2] sm:$0xff]
      %v213 = vld [vmem:[#allocation2 + $0x8] sm:$0xff]
      %v214 = vld [vmem:[#allocation2 + $0x10] sm:$0xff]
      %v215 = vpack.c.bf16 %v213, %v212
      %v216 = vpack.c.bf16 %v214, %v214
      %vm219 = vcmask 1046528
      %v220 = vrot.slane %v215, 1
      %v221 = vrot.slane %v216, 1
      %v222 = vsel %vm219, %v220, %v221
      %v224 = vsel %vm204, %v222, 0
      %vm226 = vcmask 1041408
      %v228 = vsel %vm226, %v200, 0
      %230 = vmatprep.subr.bf16.mxu0 0
      %231 = vmatpush1.bf16.msra.mxu0 %v228
      %232 = vmatprep.subr.bf16.mxu0 0
      %233 = vmatpush1.bf16.msra.mxu0 0
      %234 = vmatprep.subr.bf16.mxu0 0
      %235 = vmatpush1.bf16.msra.mxu0 0
      %236 = vmatprep.subr.bf16.mxu0 0
      %237 = vmatpush1.bf16.msra.mxu0 0
      %238 = vmatprep.subr.bf16.mxu0 0
      %239 = vmatpush1.bf16.msra.mxu0 0
      %240 = vmatprep.subr.bf16.mxu0 0
      %241 = vmatpush1.bf16.msra.mxu0 0
      %242 = vmatprep.subr.bf16.mxu0 0
      %243 = vmatpush1.bf16.msra.mxu0 0
      %244 = vmatprep.subr.bf16.mxu0 0
      %245 = vmatpush1.bf16.msra.mxu0 0
      %246 = vmatprep.subr.bf16.mxu0 0
      %247 = vmatpush1.bf16.msra.mxu0 0
      %248 = vmatprep.subr.bf16.mxu0 0
      %249 = vmatpush1.bf16.msra.mxu0 0
      %250 = vmatprep.subr.bf16.mxu0 0
      %251 = vmatpush1.bf16.msra.mxu0 0
      %252 = vmatprep.subr.bf16.mxu0 0
      %253 = vmatpush1.bf16.msra.mxu0 0
      %254 = vmatprep.subr.bf16.mxu0 0
      %255 = vmatpush1.bf16.msra.mxu0 0
      %256 = vmatprep.subr.bf16.mxu0 0
      %257 = vmatpush1.bf16.msra.mxu0 0
      %258 = vmatprep.subr.bf16.mxu0 0
      %259 = vmatpush1.bf16.msra.mxu0 0
      %260 = vmatprep.subr.bf16.mxu0 0
      %261 = vmatpush1.bf16.msra.mxu0 0
      %262 = vmatprep.mubr.bf16.mxu0 0
      %263 = vmatmul.mubr.bf16.gmra.mrb[0].mxu0 %v224
      %v264 = vpop.f32.mrb[0].mxu0
      %v265 = vadd.f32 0.0, %v264
      %v266 = vpop.f32.mrb[0].mxu0
      %v267 = vpop.f32.mrb[0].mxu0
      %v268 = vadd.f32 0.0, %v267
      %v269 = vpop.f32.mrb[0].mxu0
      %270 = vdwg.mxu0
      %v272 = vsel %vm204, %v215, 0
      %v275 = vsel %vm226, %v199, 0
      %277 = vmatprep.subr.bf16.mxu0 0
      %278 = vmatpush1.bf16.msra.mxu0 %v275
      %279 = vmatprep.subr.bf16.mxu0 0
      %280 = vmatpush1.bf16.msra.mxu0 0
      %281 = vmatprep.subr.bf16.mxu0 0
      %282 = vmatpush1.bf16.msra.mxu0 0
      %283 = vmatprep.subr.bf16.mxu0 0
      %284 = vmatpush1.bf16.msra.mxu0 0
      %285 = vmatprep.subr.bf16.mxu0 0
      %286 = vmatpush1.bf16.msra.mxu0 0
      %287 = vmatprep.subr.bf16.mxu0 0
      %288 = vmatpush1.bf16.msra.mxu0 0
      %289 = vmatprep.subr.bf16.mxu0 0
      %290 = vmatpush1.bf16.msra.mxu0 0
      %291 = vmatprep.subr.bf16.mxu0 0
      %292 = vmatpush1.bf16.msra.mxu0 0
      %293 = vmatprep.subr.bf16.mxu0 0
      %294 = vmatpush1.bf16.msra.mxu0 0
      %295 = vmatprep.subr.bf16.mxu0 0
      %296 = vmatpush1.bf16.msra.mxu0 0
      %297 = vmatprep.subr.bf16.mxu0 0
      %298 = vmatpush1.bf16.msra.mxu0 0
      %299 = vmatprep.subr.bf16.mxu0 0
      %300 = vmatpush1.bf16.msra.mxu0 0
      %301 = vmatprep.subr.bf16.mxu0 0
      %302 = vmatpush1.bf16.msra.mxu0 0
      %303 = vmatprep.subr.bf16.mxu0 0
      %304 = vmatpush1.bf16.msra.mxu0 0
      %305 = vmatprep.subr.bf16.mxu0 0
      %306 = vmatpush1.bf16.msra.mxu0 0
      %307 = vmatprep.subr.bf16.mxu0 0
      %308 = vmatpush1.bf16.msra.mxu0 0
      %309 = vmatprep.mubr.bf16.mxu0 0
      %310 = vmatmul.mubr.bf16.gmra.mrb[0].mxu0 %v272
      %v311 = vpop.f32.mrb[0].mxu0
      %v312 = vadd.f32 %v265, %v311
      %v313 = vpop.f32.mrb[0].mxu0
      %v314 = vpop.f32.mrb[0].mxu0
      %v315 = vadd.f32 %v268, %v314
      %v316 = vpop.f32.mrb[0].mxu0
      %317 = vdwg.mxu0
      %vm318 = vcmask 1045504
      %v319 = vrot.slane %v215, 2
      %v320 = vrot.slane %v216, 2
      %v321 = vsel %vm318, %v319, %v320
      %v323 = vsel %vm204, %v321, 0
      %v326 = vsel %vm226, %v201, 0
      %328 = vmatprep.subr.bf16.mxu0 0
      %329 = vmatpush1.bf16.msra.mxu0 %v326
      %330 = vmatprep.subr.bf16.mxu0 0
      %331 = vmatpush1.bf16.msra.mxu0 0
      %332 = vmatprep.subr.bf16.mxu0 0
      %333 = vmatpush1.bf16.msra.mxu0 0
      %334 = vmatprep.subr.bf16.mxu0 0
      %335 = vmatpush1.bf16.msra.mxu0 0
      %336 = vmatprep.subr.bf16.mxu0 0
      %337 = vmatpush1.bf16.msra.mxu0 0
      %338 = vmatprep.subr.bf16.mxu0 0
      %339 = vmatpush1.bf16.msra.mxu0 0
      %340 = vmatprep.subr.bf16.mxu0 0
      %341 = vmatpush1.bf16.msra.mxu0 0
      %342 = vmatprep.subr.bf16.mxu0 0
      %343 = vmatpush1.bf16.msra.mxu0 0
      %344 = vmatprep.subr.bf16.mxu0 0
      %345 = vmatpush1.bf16.msra.mxu0 0
      %346 = vmatprep.subr.bf16.mxu0 0
      %347 = vmatpush1.bf16.msra.mxu0 0
      %348 = vmatprep.subr.bf16.mxu0 0
      %349 = vmatpush1.bf16.msra.mxu0 0
      %350 = vmatprep.subr.bf16.mxu0 0
      %351 = vmatpush1.bf16.msra.mxu0 0
      %352 = vmatprep.subr.bf16.mxu0 0
      %353 = vmatpush1.bf16.msra.mxu0 0
      %354 = vmatprep.subr.bf16.mxu0 0
      %355 = vmatpush1.bf16.msra.mxu0 0
      %356 = vmatprep.subr.bf16.mxu0 0
      %357 = vmatpush1.bf16.msra.mxu0 0
      %358 = vmatprep.subr.bf16.mxu0 0
      %359 = vmatpush1.bf16.msra.mxu0 0
      %360 = vmatprep.mubr.bf16.mxu0 0
      %361 = vmatmul.mubr.bf16.gmra.mrb[0].mxu0 %v323
      %v362 = vpop.f32.mrb[0].mxu0
      %v363 = vadd.f32 0.0, %v362
      %v364 = vpop.f32.mrb[0].mxu0
      %v365 = vpop.f32.mrb[0].mxu0
      %v366 = vadd.f32 0.0, %v365
      %v367 = vpop.f32.mrb[0].mxu0
      %368 = vdwg.mxu0
      %v369 = vadd.f32 %v312, %v363
      %v370 = vadd.f32 %v315, %v366
      %vm371 = vcmask 1044480
      %v372 = vrot.slane %v215, 3
      %v373 = vrot.slane %v216, 3
      %v374 = vsel %vm371, %v372, %v373
      %v376 = vsel %vm204, %v374, 0
      %v379 = vsel %vm226, %v202, 0
      %381 = vmatprep.subr.bf16.mxu0 0
      %382 = vmatpush1.bf16.msra.mxu0 %v379
      %383 = vmatprep.subr.bf16.mxu0 0
      %384 = vmatpush1.bf16.msra.mxu0 0
      %385 = vmatprep.subr.bf16.mxu0 0
      %386 = vmatpush1.bf16.msra.mxu0 0
      %387 = vmatprep.subr.bf16.mxu0 0
      %388 = vmatpush1.bf16.msra.mxu0 0
      %389 = vmatprep.subr.bf16.mxu0 0
      %390 = vmatpush1.bf16.msra.mxu0 0
      %391 = vmatprep.subr.bf16.mxu0 0
      %392 = vmatpush1.bf16.msra.mxu0 0
      %393 = vmatprep.subr.bf16.mxu0 0
      %394 = vmatpush1.bf16.msra.mxu0 0
      %395 = vmatprep.subr.bf16.mxu0 0
      %396 = vmatpush1.bf16.msra.mxu0 0
      %397 = vmatprep.subr.bf16.mxu0 0
      %398 = vmatpush1.bf16.msra.mxu0 0
      %399 = vmatprep.subr.bf16.mxu0 0
      %400 = vmatpush1.bf16.msra.mxu0 0
      %401 = vmatprep.subr.bf16.mxu0 0
      %402 = vmatpush1.bf16.msra.mxu0 0
      %403 = vmatprep.subr.bf16.mxu0 0
      %404 = vmatpush1.bf16.msra.mxu0 0
      %405 = vmatprep.subr.bf16.mxu0 0
      %406 = vmatpush1.bf16.msra.mxu0 0
      %407 = vmatprep.subr.bf16.mxu0 0
      %408 = vmatpush1.bf16.msra.mxu0 0
      %409 = vmatprep.subr.bf16.mxu0 0
      %410 = vmatpush1.bf16.msra.mxu0 0
      %411 = vmatprep.subr.bf16.mxu0 0
      %412 = vmatpush1.bf16.msra.mxu0 0
      %413 = vmatprep.mubr.bf16.mxu0 0
      %414 = vmatmul.mubr.bf16.gmra.mrb[0].mxu0 %v376
      %v415 = vpop.f32.mrb[0].mxu0
      %v416 = vadd.f32 0.0, %v415
      %v417 = vpop.f32.mrb[0].mxu0
      %v418 = vpop.f32.mrb[0].mxu0
      %v419 = vadd.f32 0.0, %v418
      %v420 = vpop.f32.mrb[0].mxu0
      %421 = vdwg.mxu0
      %v422 = vadd.f32 %v369, %v416
      %v423 = vadd.f32 %v370, %v419
      %v424 = vpack.c.bf16 %v214, %v213
      %v426 = vsel %vm204, %v424, 0
      %v429 = vsel %vm226, %v203, 0
      %431 = vmatprep.subr.bf16.mxu0 0
      %432 = vmatpush1.bf16.msra.mxu0 %v429
      %433 = vmatprep.subr.bf16.mxu0 0
      %434 = vmatpush1.bf16.msra.mxu0 0
      %435 = vmatprep.subr.bf16.mxu0 0
      %436 = vmatpush1.bf16.msra.mxu0 0
      %437 = vmatprep.subr.bf16.mxu0 0
      %438 = vmatpush1.bf16.msra.mxu0 0
      %439 = vmatprep.subr.bf16.mxu0 0
      %440 = vmatpush1.bf16.msra.mxu0 0
      %441 = vmatprep.subr.bf16.mxu0 0
      %442 = vmatpush1.bf16.msra.mxu0 0
      %443 = vmatprep.subr.bf16.mxu0 0
      %444 = vmatpush1.bf16.msra.mxu0 0
      %445 = vmatprep.subr.bf16.mxu0 0
      %446 = vmatpush1.bf16.msra.mxu0 0
      %447 = vmatprep.subr.bf16.mxu0 0
      %448 = vmatpush1.bf16.msra.mxu0 0
      %449 = vmatprep.subr.bf16.mxu0 0
      %450 = vmatpush1.bf16.msra.mxu0 0
      %451 = vmatprep.subr.bf16.mxu0 0
      %452 = vmatpush1.bf16.msra.mxu0 0
      %453 = vmatprep.subr.bf16.mxu0 0
      %454 = vmatpush1.bf16.msra.mxu0 0
      %455 = vmatprep.subr.bf16.mxu0 0
      %456 = vmatpush1.bf16.msra.mxu0 0
      %457 = vmatprep.subr.bf16.mxu0 0
      %458 = vmatpush1.bf16.msra.mxu0 0
      %459 = vmatprep.subr.bf16.mxu0 0
      %460 = vmatpush1.bf16.msra.mxu0 0
      %461 = vmatprep.subr.bf16.mxu0 0
      %462 = vmatpush1.bf16.msra.mxu0 0
      %463 = vmatprep.mubr.bf16.mxu0 0
      %464 = vmatmul.mubr.bf16.gmra.mrb[0].mxu0 %v426
      %v465 = vpop.f32.mrb[0].mxu0
      %v466 = vadd.f32 0.0, %v465
      %v467 = vpop.f32.mrb[0].mxu0
      %v468 = vpop.f32.mrb[0].mxu0
      %v469 = vadd.f32 0.0, %v468
      %v470 = vpop.f32.mrb[0].mxu0
      %471 = vdwg.mxu0
      %v472 = vadd.f32 %v422, %v466
      %v473 = vadd.f32 %v423, %v469
      %v474 = vld [vmem:[%s2] sm:$0x1]
      %v476 = vlaneseq
      %v477 = vshrl.u32 %v476, 7
      %v478 = vsub.s32 0, %v477
      %v479 = vrot.slane %v474, %v478
      %v481 = vmul.f32 %v472, %v479
      %v482 = vmul.f32 %v473, %v479
      %v483 = vld [vmem:[%s3] sm:$0x1]
      %v485 = vlaneseq
      %v486 = vshrl.u32 %v485, 7
      %v487 = vsub.s32 0, %v486
      %v488 = vrot.slane %v483, %v487
      %v490 = vadd.f32 %v481, %v488
      %v491 = vadd.f32 %v482, %v488
      %v492 = vmax.f32 %v490, 0.0
      %v493 = vmax.f32 %v491, 0.0
      %vm494 = vcmask 64512
      %495 = vst.msk [vmem:[%s197] sm:$0xff] %vm494, %v492
      %496 = vst.msk [vmem:[%s197 + $0x8] sm:$0xff] %vm494, %v493
      %p497 = scmp.lt.s32.totalorder %s15, 1
      %s498 = scalar_select %p497, %s15, 1
      %s499 = smul.addr %s498, 2
      %s500 = smul.addr %s499, 8
      %s501 = scalar_lea.vmem %s4, %s500
      // Predicated region
      $region37: #{_lambda_.4} parent=35 // pred_check
        %p502 = pneg %p122
      $region38: #{_lambda_.4} parent=35 // pred_check_branch
        %504 = sbr.rel (%p502) target = $region40
      $region39: #{_lambda_.4} parent=35 // pred_region
        _
      $region40: #{_lambda_.4} parent=35 // pred_fallthru
        _
    $region36: #{_lambda_.4} parent=5 // pred_fallthru
      _
    %p505 = scmp.le.s32.totalorder 2, %s10
    // Predicated region
    $region41: #{_lambda_.4} parent=5 // pred_check
      %p506 = pneg %p505
    $region42: #{_lambda_.4} parent=5 // pred_check_branch
      %508 = sbr.rel (%p506) target = $region44
    $region43: #{_lambda_.4} parent=5 // pred_region
      %s509 = ssub.s32 %s10, 2
      // Predicated region
      $region45: #{_lambda_.4} parent=43 // pred_check
        %p510 = pneg %p128
      $region46: #{_lambda_.4} parent=43 // pred_check_branch
        %512 = sbr.rel (%p510) target = $region48
      $region47: #{_lambda_.4} parent=43 // pred_region
        %p513 = scmp.lt.s32.totalorder %s16, 1
        %s514 = scalar_select %p513, %s16, 1
        %s515 = smul.addr %s514, 2
        %s516 = smul.addr %s515, 8
        %s517 = scalar_lea.vmem %s4, %s516
      $region48: #{_lambda_.4} parent=43 // pred_fallthru
        _
    $region44: #{_lambda_.4} parent=5 // pred_fallthru
      _
  $region6: #{_lambda_.4} parent=0 // loop_footer
    %s14 = sadd.s32 1, %s10
  $region7: #{_lambda_.4} parent=0 // loop_footer_branch
    %9 = sbr.rel target = $region3
  $region8: #{_lambda_.4} parent=0 // loop_exit
    _

</llo_original>
